<compile_context>
chip_gen: v5e
topology: v5e:2x2
jax: 0.10.0
libtpu: 0.0.40
codegen_flags: <defaults>
</compile_context>

<pallas_src>
import functools

import jax
import jax.numpy as jnp
import numpy as np
from jax.experimental import pallas as pl
from jax.experimental.pallas import tpu as pltpu


# ---------------------------------------------------------------------------
# Strided-roll feature / convention detection.
# One tiny probe at a FIXED shape (8, 256); the full-row comparison against
# both rotation conventions doubles as the build-time cross-check requested in
# review.  Cached globally so tile-size sweeps never recompile the probe.
# ---------------------------------------------------------------------------
_ROLL_MODE = None


def _detect_roll_mode():
    """'np'   -> rolled[w, j] == xs[(j - w) % S]
       'inv'  -> rolled[w, j] == xs[(j + w) % S]
       'none' -> strided roll unavailable / unexpected convention."""
    global _ROLL_MODE
    if _ROLL_MODE is not None:
        return _ROLL_MODE
    R, S = 8, 256

    def probe_kernel(x_ref, o_ref):
        b = jnp.broadcast_to(x_ref[...], (R, S))
        o_ref[...] = pltpu.roll(b, 0, 1, stride=1, stride_axis=0)

    mode = "none"
    try:
        xs = jnp.arange(S, dtype=jnp.float32)[None, :]
        out = jax.device_get(jax.block_until_ready(
            pl.pallas_call(
                probe_kernel,
                out_shape=jax.ShapeDtypeStruct((R, S), jnp.float32),
            )(xs)))
        m = np.arange(S)[None, :]
        w = np.arange(R)[:, None]
        if np.array_equal(out, ((m - w) % S).astype(np.float32)):
            mode = "np"
        elif np.array_equal(out, ((m + w) % S).astype(np.float32)):
            mode = "inv"
    except Exception:
        mode = "none"
    _ROLL_MODE = mode
    return mode


# ---------------------------------------------------------------------------
# Kernel: one (channel, time-tile) grid step.
# ---------------------------------------------------------------------------
def _vqt_kernel(x_ref, k_ref, pool_ref, o_ref, *, mode, TN, SW, OFF, mask_n):
    """
    x_ref:    (1, 1, Lpad)  bf16  resident padded signal row for this channel
    k_ref:    (2F, W)       bf16  stacked [real; imag] filters (resident)
    pool_ref: (TN, TN/ds)   bf16  uniform 1/ds pooling weights (resident)
    o_ref:    (1, F, TN/ds) f32
    """
    F2, W = k_ref.shape
    Fb = F2 // 2

    t = pl.program_id(1)
    start = pl.multiple_of(t * TN, 128)

    # Lane-aligned dynamic window of the resident row (bf16 in VMEM).
    slab = x_ref[:, :, pl.ds(start, SW)]               # (1, 1, SW) bf16
    xs = slab[0].astype(jnp.float32)                    # (1, SW)    f32

    # --- im2col: build the (W, TN) patch matrix fully in vregs ---------------
    if mode == "none":
        # Slow but correct fallback (W unaligned lane slices); only used if the
        # strided-roll probe failed.  TODO(synk): replace with W roll-by-1 steps.
        patches = jnp.concatenate([xs[:, w:w + TN] for w in range(W)], axis=0)
    else:
        # Fast path: sublane-broadcast + ONE strided XLU roll gives all W shifts;
        # the wrapper chose the slab origin so this slice is 128-lane aligned.
        bcast = jnp.broadcast_to(xs, (W, SW))
        rolled = pltpu.roll(bcast, 0, 1, stride=1, stride_axis=0)
        off = OFF if mode == "np" else 0
        patches = rolled[:, off:off + TN]                # (W, TN)
    # (The wrapper flips the filter taps when needed so k_ref @ patches always
    #  equals torch's conv1d(x, flip(filters), padding='same').)

    # --- conv1d: one bf16 MXU matmul for both real and imag responses --------
    y = jnp.dot(k_ref[...], patches.astype(jnp.bfloat16),
                preferred_element_type=jnp.float32)      # (2F, TN) f32
    yr, yi = y[:Fb], y[Fb:]
    mag = jnp.sqrt(yr * yr + yi * yi)                    # f32 envelope (take_abs)

    # Zero columns past the true signal end so the wrapper-side rescale of the
    # final partial pooling window is exact (only compiled in when N % ds != 0).
    if mask_n is not None:
        col = start + jax.lax.broadcasted_iota(jnp.int32, (1, TN), 1)
        mag = jnp.where(col < mask_n, mag, 0.0)

    # --- avg pool (kernel=ds, stride=ds) as a resident bf16 matmul -----------
    # bf16 x bf16 with f32 accumulation: 1/ds is exact in bf16 for power-of-two
    # ds, and the cast pins the matmul precision explicitly.
    o_ref[0] = jnp.dot(mag.astype(jnp.bfloat16), pool_ref[...],
                       preferred_element_type=jnp.float32)


# ---------------------------------------------------------------------------
# Wrapper.
# ---------------------------------------------------------------------------
def vqt_forward(x, filt_real, filt_imag, *, ds_factor=4, time_tile=1024):
    """x: (C, N) float32.  filt_real/filt_imag: (F, W) real/imag parts of the
    complex VQT filters.  Returns (C, F, ceil(N / ds_factor)) float32."""
    assert x.ndim == 2 and filt_real.shape == filt_imag.shape
    C, N = x.shape
    Fb, W = filt_real.shape
    ds = int(ds_factor)

    TN = int(time_tile)
    assert TN % ds == 0, "time_tile must be a multiple of ds_factor"
    assert TN % 128 == 0, "time_tile must be a multiple of 128"
    TNds = TN // ds
    NT = -(-N // TN)                          # number of time tiles
    N_ds = -(-N // ds)                        # ceil_mode output length

    # torch F.conv1d(padding='same'): (W-1)//2 zeros on the left, rest on right.
    L = (W - 1) // 2
    R = W - 1 - L
    OFF = -(-(W - 1) // 128) * 128            # lane-aligned patch-slice offset
    SW = TN + OFF                             # per-tile slab width (lane aligned)
    Lpad = NT * TN + OFF                      # resident row length

    mode = _detect_roll_mode()

    # Bake the conv-padding (and, for the 'np' roll convention, the W-1 shift)
    # into the row's left padding so every in-kernel slice starts at lane t*TN.
    P_left = (OFF - R) if mode == "np" else L
    xrow = jnp.pad(x.astype(jnp.float32), ((0, 0), (P_left, Lpad - N - P_left)))
    xrow = xrow.astype(jnp.bfloat16)[:, None, :]          # (C, 1, Lpad) bf16

    # Stack real & imag filters -> a single MXU matmul; bf16 operands, f32 acc.
    k_stack = jnp.concatenate([filt_real, filt_imag], axis=0).astype(jnp.float32)
    if mode != "np":
        k_stack = k_stack[:, ::-1]            # these patch layouts need flipped taps
    k_stack = k_stack.astype(jnp.bfloat16)    # (2F, W)

    # Single, permanently-resident interior pooling block (uniform 1/ds, bf16).
    r = jnp.arange(TN)
    c = jnp.arange(TNds)
    member = (r[:, None] // ds) == c[None, :]
    pool = (member.astype(jnp.float32) * (1.0 / ds)).astype(jnp.bfloat16)

    mask_n = N if (N % ds != 0) else None
    kernel = functools.partial(_vqt_kernel, mode=mode, TN=TN, SW=SW, OFF=OFF,
                               mask_n=mask_n)

    # VMEM budget: resident row + pool + filters (double-buffered) + working set.
    vmem_need = (2 * Lpad * 2 + 2 * TN * TNds * 2 + 2 * 2 * Fb * W * 2
                 + 2 * Fb * TNds * 4 + 6 * W * SW * 4)
    vmem_bytes = int(min(56 << 20, max(32 << 20, 2 * vmem_need)))

    out = pl.pallas_call(
        kernel,
        out_shape=jax.ShapeDtypeStruct((C, Fb, NT * TNds), jnp.float32),
        grid_spec=pltpu.PrefetchScalarGridSpec(
            num_scalar_prefetch=0,
            grid=(C, NT),                                 # channels x time tiles
            in_specs=[
                # padded signal row: resident across the whole time axis
                pl.BlockSpec((1, 1, Lpad), lambda c, t: (c, 0, 0)),
                # stacked filters: resident for the whole grid
                pl.BlockSpec((2 * Fb, W), lambda c, t: (0, 0)),
                # pooling weights: resident for the whole grid
                pl.BlockSpec((TN, TNds), lambda c, t: (0, 0)),
            ],
            out_specs=pl.BlockSpec((1, Fb, TNds), lambda c, t: (c, 0, t)),
        ),
        compiler_params=pltpu.CompilerParams(
            dimension_semantics=("parallel", "parallel"),
            vmem_limit_bytes=vmem_bytes,
        ),
    )(xrow, k_stack, pool)

    out = out[:, :, :N_ds]
    # ceil_mode / count_include_pad=False: the last window averages only the
    # N % ds valid samples (the kernel zeroed the rest), so rescale its mean.
    if N % ds != 0:
        out = out.at[:, :, N_ds - 1].multiply(float(ds) / float(N % ds))
    return out


# ---------------------------------------------------------------------------
# Demo / self-test.
# ---------------------------------------------------------------------------
if __name__ == "__main__":
    # Small, TPU-friendly VQT configuration (exercises multiple time tiles and
    # the ceil_mode partial last pooling window).
    C, N = 2, 2050         # channels, samples
    Fb, W = 16, 33         # n_freq_bins, win_size (odd, as recommended)
    ds = 4                 # downsample_factor
    Fs, Qlo, Qhi, Fmin, Fmax = 1000.0, 1.0, 8.0, 50.0, 400.0

    # Deterministic synthetic VQT filters: gaussian-windowed complex sinusoids
    # (shape (n_freq_bins, win_size), matching VQT_filters.make_filters()).
    freqs = jnp.geomspace(Fmin, Fmax, Fb)
    Qs = jnp.linspace(Qlo, Qhi, Fb)
    t = jnp.arange(W, dtype=jnp.float32) - (W - 1) / 2.0
    sigmas = Qs * Fs / (4.0 * freqs)                 # ~Q cycles within 4 sigma
    win = jnp.exp(-0.5 * (t[None, :] / sigmas[:, None]) ** 2)
    phase = 2.0 * jnp.pi * freqs[:, None] * t[None, :] / Fs
    filt_r = (win * jnp.cos(phase)).astype(jnp.float32)
    filt_i = (win * jnp.sin(phase)).astype(jnp.float32)

    # Deterministic input signal
    key = jax.random.PRNGKey(0)
    x = jax.random.normal(key, (C, N), dtype=jnp.float32)

    out = vqt_forward(x, filt_r, filt_i, ds_factor=ds, time_tile=1024)
    out = jax.block_until_ready(out)

    # ---- pure-JAX references ----
    L = (W - 1) // 2
    R = W - 1 - L
    N_ds = -(-N // ds)
    hp = jax.lax.Precision.HIGHEST

    def reference(kr, ki, sig, round_mag=False):
        xp = jnp.pad(sig, ((0, 0), (L, R)))
        pat = jnp.stack([xp[:, w:w + N] for w in range(W)], axis=1)   # (C, W, N)
        yr = jnp.einsum('fw,cwn->cfn', kr[:, ::-1], pat, precision=hp)
        yi = jnp.einsum('fw,cwn->cfn', ki[:, ::-1], pat, precision=hp)
        mag = jnp.sqrt(yr ** 2 + yi ** 2)
        if round_mag:
            mag = mag.astype(jnp.bfloat16).astype(jnp.float32)
        # avg_pool1d(ds, stride=ds, ceil_mode=True, count_include_pad=False)
        magp = jnp.pad(mag, ((0, 0), (0, 0), (0, N_ds * ds - N)))
        sums = magp.reshape(C, Fb, N_ds, ds).sum(-1)
        counts = jnp.minimum(N - jnp.arange(N_ds) * ds, ds).astype(jnp.float32)
        return sums / counts[None, None, :]

    # (a) same-precision reference: conv operands + pooled magnitudes rounded
    #     to bf16 exactly as the kernel does.
    bf = lambda a: a.astype(jnp.bfloat16).astype(jnp.float32)
    ref_bf16 = reference(bf(filt_r), bf(filt_i), bf(x), round_mag=True)
    # (b) full-precision reference (semantic check; gap = bf16 operand rounding).
    ref_f32 = reference(filt_r, filt_i, x, round_mag=False)

    assert out.shape == (C, Fb, N_ds), out.shape
    err_a = float(jnp.max(jnp.abs(out - ref_bf16)))
    err_b = float(jnp.max(jnp.abs(out - ref_f32)))
    assert jnp.allclose(out, ref_bf16, rtol=2e-2, atol=2e-2), err_a
    assert jnp.allclose(out, ref_f32, rtol=5e-2, atol=5e-2), err_b
    print("KERNEL_OK")
</pallas_src>

<mosaic_0001>
module attributes {stable_mosaic.version = 11 : i64} {
  func.func @probe_kernel(%arg0: memref<1x256xf32, #tpu.memory_space<vmem>>, %arg1: memref<8x256xf32, #tpu.memory_space<vmem>>) attributes {dimension_semantics = [], scalar_prefetch = 0 : i64, scratch_operands = 0 : i64, tpu.core_type = #tpu.core_type<tc>} {
    %c0 = arith.constant 0 : index
    %c0_0 = arith.constant 0 : index
    %0 = vector.load %arg0[%c0, %c0_0] : memref<1x256xf32, #tpu.memory_space<vmem>>, vector<1x256xf32>
    %1 = vector.shape_cast %0 : vector<1x256xf32> to vector<1x256xf32>
    %2 = vector.broadcast %1 : vector<1x256xf32> to vector<8x256xf32>
    %c0_i32 = arith.constant 0 : i32
    %3 = tpu.dynamic_rotate %2 by %c0_i32 dim 1 {stride = 1 : si32, stride_dimension = 0 : si32} : vector<8x256xf32>, i32 -> vector<8x256xf32>
    %c0_1 = arith.constant 0 : index
    %c0_2 = arith.constant 0 : index
    %4 = vector.load %arg1[%c0_1, %c0_2] : memref<8x256xf32, #tpu.memory_space<vmem>>, vector<8x256xf32>
    tpu.vector_store %arg1[%c0_1, %c0_2], %3 {strides = array<i32>} : memref<8x256xf32, #tpu.memory_space<vmem>>, vector<8x256xf32>,
    return
  }
}

module attributes {stable_mosaic.version = 11 : i64} {
  func.func @_vqt_kernel(%arg0: i32, %arg1: i32, %arg2: memref<1x1x3200xbf16, #tpu.memory_space<vmem>>, %arg3: memref<32x33xbf16, #tpu.memory_space<vmem>>, %arg4: memref<1024x256xbf16, #tpu.memory_space<vmem>>, %arg5: memref<1x16x256xf32, #tpu.memory_space<vmem>>) attributes {dimension_semantics = [#tpu.dimension_semantics<parallel>, #tpu.dimension_semantics<parallel>], iteration_bounds = array<i64: 2, 3>, scalar_prefetch = 0 : i64, scratch_operands = 0 : i64, tpu.core_type = #tpu.core_type<tc>, window_params = [{transform_indices = @transform_0, window_bounds = array<i64: 1, 1, 3200>}, {pipeline_mode = #tpu.pipeline_mode<synchronous>, transform_indices = @transform_1, window_bounds = array<i64: 32, 33>}, {pipeline_mode = #tpu.pipeline_mode<synchronous>, transform_indices = @transform_2, window_bounds = array<i64: 1024, 256>}, {transform_indices = @transform_3, window_bounds = array<i64: 1, 16, 256>}]} {
    %c1024_i32 = arith.constant 1024 : i32
    %0 = arith.muli %arg1, %c1024_i32 : i32
    %1 = tpu.assume_multiple %0, 128 : i32
    %c0 = arith.constant 0 : index
    %c0_0 = arith.constant 0 : index
    %2 = arith.index_cast %1 : i32 to index
    %3 = vector.load %arg2[%c0, %c0_0, %2] : memref<1x1x3200xbf16, #tpu.memory_space<vmem>>, vector<1x1x1152xbf16>
    %4 = vector.shape_cast %3 : vector<1x1x1152xbf16> to vector<1x1152xbf16>
    %5 = arith.extf %4 : vector<1x1152xbf16> to vector<1x1152xf32>
    %6 = vector.extract_strided_slice %5 {offsets = [0, 0], sizes = [1, 1024], strides = [1, 1]} : vector<1x1152xf32> to vector<1x1024xf32>
    %7 = vector.extract_strided_slice %5 {offsets = [0, 1], sizes = [1, 1024], strides = [1, 1]} : vector<1x1152xf32> to vector<1x1024xf32>
    %8 = vector.extract_strided_slice %5 {offsets = [0, 2], sizes = [1, 1024], strides = [1, 1]} : vector<1x1152xf32> to vector<1x1024xf32>
    %9 = vector.extract_strided_slice %5 {offsets = [0, 3], sizes = [1, 1024], strides = [1, 1]} : vector<1x1152xf32> to vector<1x1024xf32>
    %10 = vector.extract_strided_slice %5 {offsets = [0, 4], sizes = [1, 1024], strides = [1, 1]} : vector<1x1152xf32> to vector<1x1024xf32>
    %11 = vector.extract_strided_slice %5 {offsets = [0, 5], sizes = [1, 1024], strides = [1, 1]} : vector<1x1152xf32> to vector<1x1024xf32>
    %12 = vector.extract_strided_slice %5 {offsets = [0, 6], sizes = [1, 1024], strides = [1, 1]} : vector<1x1152xf32> to vector<1x1024xf32>
    %13 = vector.extract_strided_slice %5 {offsets = [0, 7], sizes = [1, 1024], strides = [1, 1]} : vector<1x1152xf32> to vector<1x1024xf32>
    %14 = vector.extract_strided_slice %5 {offsets = [0, 8], sizes = [1, 1024], strides = [1, 1]} : vector<1x1152xf32> to vector<1x1024xf32>
    %15 = vector.extract_strided_slice %5 {offsets = [0, 9], sizes = [1, 1024], strides = [1, 1]} : vector<1x1152xf32> to vector<1x1024xf32>
    %16 = vector.extract_strided_slice %5 {offsets = [0, 10], sizes = [1, 1024], strides = [1, 1]} : vector<1x1152xf32> to vector<1x1024xf32>
    %17 = vector.extract_strided_slice %5 {offsets = [0, 11], sizes = [1, 1024], strides = [1, 1]} : vector<1x1152xf32> to vector<1x1024xf32>
    %18 = vector.extract_strided_slice %5 {offsets = [0, 12], sizes = [1, 1024], strides = [1, 1]} : vector<1x1152xf32> to vector<1x1024xf32>
    %19 = vector.extract_strided_slice %5 {offsets = [0, 13], sizes = [1, 1024], strides = [1, 1]} : vector<1x1152xf32> to vector<1x1024xf32>
    %20 = vector.extract_strided_slice %5 {offsets = [0, 14], sizes = [1, 1024], strides = [1, 1]} : vector<1x1152xf32> to vector<1x1024xf32>
    %21 = vector.extract_strided_slice %5 {offsets = [0, 15], sizes = [1, 1024], strides = [1, 1]} : vector<1x1152xf32> to vector<1x1024xf32>
    %22 = vector.extract_strided_slice %5 {offsets = [0, 16], sizes = [1, 1024], strides = [1, 1]} : vector<1x1152xf32> to vector<1x1024xf32>
    %23 = vector.extract_strided_slice %5 {offsets = [0, 17], sizes = [1, 1024], strides = [1, 1]} : vector<1x1152xf32> to vector<1x1024xf32>
    %24 = vector.extract_strided_slice %5 {offsets = [0, 18], sizes = [1, 1024], strides = [1, 1]} : vector<1x1152xf32> to vector<1x1024xf32>
    %25 = vector.extract_strided_slice %5 {offsets = [0, 19], sizes = [1, 1024], strides = [1, 1]} : vector<1x1152xf32> to vector<1x1024xf32>
    %26 = vector.extract_strided_slice %5 {offsets = [0, 20], sizes = [1, 1024], strides = [1, 1]} : vector<1x1152xf32> to vector<1x1024xf32>
    %27 = vector.extract_strided_slice %5 {offsets = [0, 21], sizes = [1, 1024], strides = [1, 1]} : vector<1x1152xf32> to vector<1x1024xf32>
    %28 = vector.extract_strided_slice %5 {offsets = [0, 22], sizes = [1, 1024], strides = [1, 1]} : vector<1x1152xf32> to vector<1x1024xf32>
    %29 = vector.extract_strided_slice %5 {offsets = [0, 23], sizes = [1, 1024], strides = [1, 1]} : vector<1x1152xf32> to vector<1x1024xf32>
    %30 = vector.extract_strided_slice %5 {offsets = [0, 24], sizes = [1, 1024], strides = [1, 1]} : vector<1x1152xf32> to vector<1x1024xf32>
    %31 = vector.extract_strided_slice %5 {offsets = [0, 25], sizes = [1, 1024], strides = [1, 1]} : vector<1x1152xf32> to vector<1x1024xf32>
    %32 = vector.extract_strided_slice %5 {offsets = [0, 26], sizes = [1, 1024], strides = [1, 1]} : vector<1x1152xf32> to vector<1x1024xf32>
    %33 = vector.extract_strided_slice %5 {offsets = [0, 27], sizes = [1, 1024], strides = [1, 1]} : vector<1x1152xf32> to vector<1x1024xf32>
    %34 = vector.extract_strided_slice %5 {offsets = [0, 28], sizes = [1, 1024], strides = [1, 1]} : vector<1x1152xf32> to vector<1x1024xf32>
    %35 = vector.extract_strided_slice %5 {offsets = [0, 29], sizes = [1, 1024], strides = [1, 1]} : vector<1x1152xf32> to vector<1x1024xf32>
    %36 = vector.extract_strided_slice %5 {offsets = [0, 30], sizes = [1, 1024], strides = [1, 1]} : vector<1x1152xf32> to vector<1x1024xf32>
    %37 = vector.extract_strided_slice %5 {offsets = [0, 31], sizes = [1, 1024], strides = [1, 1]} : vector<1x1152xf32> to vector<1x1024xf32>
    %38 = vector.extract_strided_slice %5 {offsets = [0, 32], sizes = [1, 1024], strides = [1, 1]} : vector<1x1152xf32> to vector<1x1024xf32>
    %39 = tpu.concatenate %6, %7, %8, %9, %10, %11, %12, %13, %14, %15, %16, %17, %18, %19, %20, %21 in 0 : vector<1x1024xf32>, vector<1x1024xf32>, vector<1x1024xf32>, vector<1x1024xf32>, vector<1x1024xf32>, vector<1x1024xf32>, vector<1x1024xf32>, vector<1x1024xf32>, vector<1x1024xf32>, vector<1x1024xf32>, vector<1x1024xf32>, vector<1x1024xf32>, vector<1x1024xf32>, vector<1x1024xf32>, vector<1x1024xf32>, vector<1x1024xf32> -> vector<16x1024xf32>
    %40 = tpu.concatenate %22, %23, %24, %25, %26, %27, %28, %29, %30, %31, %32, %33, %34, %35, %36, %37 in 0 : vector<1x1024xf32>, vector<1x1024xf32>, vector<1x1024xf32>, vector<1x1024xf32>, vector<1x1024xf32>, vector<1x1024xf32>, vector<1x1024xf32>, vector<1x1024xf32>, vector<1x1024xf32>, vector<1x1024xf32>, vector<1x1024xf32>, vector<1x1024xf32>, vector<1x1024xf32>, vector<1x1024xf32>, vector<1x1024xf32>, vector<1x1024xf32> -> vector<16x1024xf32>
    %41 = tpu.concatenate %39, %40, %38 in 0 : vector<16x1024xf32>, vector<16x1024xf32>, vector<1x1024xf32> -> vector<33x1024xf32>
    %c0_1 = arith.constant 0 : index
    %c0_2 = arith.constant 0 : index
    %42 = vector.load %arg3[%c0_1, %c0_2] : memref<32x33xbf16, #tpu.memory_space<vmem>>, vector<32x33xbf16>
    %43 = arith.truncf %41 : vector<33x1024xf32> to vector<33x1024xbf16>
    %cst = arith.constant dense<0.000000e+00> : vector<32x1024xf32>
    %44 = tpu.matmul %42, %43, %cst {dimension_numbers = #tpu.dot_dimension_numbers<[1], [0], [0], [1], [0, 0, 1, 1], [], []>} : vector<32x33xbf16>, vector<33x1024xbf16>, vector<32x1024xf32> -> vector<32x1024xf32>
    %45 = vector.extract_strided_slice %44 {offsets = [0, 0], sizes = [16, 1024], strides = [1, 1]} : vector<32x1024xf32> to vector<16x1024xf32>
    %46 = vector.extract_strided_slice %44 {offsets = [16, 0], sizes = [16, 1024], strides = [1, 1]} : vector<32x1024xf32> to vector<16x1024xf32>
    %47 = arith.mulf %45, %45 : vector<16x1024xf32>
    %48 = arith.mulf %46, %46 : vector<16x1024xf32>
    %49 = arith.addf %47, %48 : vector<16x1024xf32>
    %50 = math.sqrt %49 : vector<16x1024xf32>
    %51 = tpu.iota {dimensions = array<i32: 1>} : vector<1x1024xi32>
    %52 = vector.broadcast %1 : i32 to vector<1x1024xi32>
    %53 = arith.addi %52, %51 : vector<1x1024xi32>
    %c2050_i32 = arith.constant 2050 : i32
    %54 = vector.broadcast %c2050_i32 : i32 to vector<1x1024xi32>
    %55 = arith.cmpi slt, %53, %54 : vector<1x1024xi32>
    %cst_3 = arith.constant 0.000000e+00 : f32
    %56 = vector.shape_cast %55 : vector<1x1024xi1> to vector<1x1024xi1>
    %57 = vector.broadcast %56 : vector<1x1024xi1> to vector<16x1024xi1>
    %58 = vector.broadcast %cst_3 : f32 to vector<16x1024xf32>
    %59 = arith.select %57, %50, %58 : vector<16x1024xi1>, vector<16x1024xf32>
    %60 = arith.truncf %59 : vector<16x1024xf32> to vector<16x1024xbf16>
    %c0_4 = arith.constant 0 : index
    %c0_5 = arith.constant 0 : index
    %61 = vector.load %arg4[%c0_4, %c0_5] : memref<1024x256xbf16, #tpu.memory_space<vmem>>, vector<1024x256xbf16>
    %cst_6 = arith.constant dense<0.000000e+00> : vector<16x256xf32>
    %62 = tpu.matmul %60, %61, %cst_6 {dimension_numbers = #tpu.dot_dimension_numbers<[1], [0], [0], [1], [0, 0, 1, 1], [], []>} : vector<16x1024xbf16>, vector<1024x256xbf16>, vector<16x256xf32> -> vector<16x256xf32>
    %c0_7 = arith.constant 0 : index
    %c0_8 = arith.constant 0 : index
    %c0_9 = arith.constant 0 : index
    %63 = vector.load %arg5[%c0_7, %c0_8, %c0_9] : memref<1x16x256xf32, #tpu.memory_space<vmem>>, vector<1x16x256xf32>
    %64 = vector.shape_cast %63 : vector<1x16x256xf32> to vector<16x256xf32>
    %65 = vector.shape_cast %62 : vector<16x256xf32> to vector<1x16x256xf32>
    tpu.vector_store %arg5[%c0_7, %c0_8, %c0_9], %65 {strides = array<i32>} : memref<1x16x256xf32, #tpu.memory_space<vmem>>, vector<1x16x256xf32>,
    return
  }
  func.func @transform_0(%arg0: i32, %arg1: i32) -> (i32, i32, i32) {
    %c0_i32 = arith.constant 0 : i32
    %c0_i32_0 = arith.constant 0 : i32
    %c0_i32_1 = arith.constant 0 : i32
    return %arg0, %c0_i32, %c0_i32_0 : i32, i32, i32
  }
  func.func @transform_1(%arg0: i32, %arg1: i32) -> (i32, i32) {
    %c0_i32 = arith.constant 0 : i32
    %c0_i32_0 = arith.constant 0 : i32
    %c0_i32_1 = arith.constant 0 : i32
    return %c0_i32, %c0_i32_0 : i32, i32
  }
  func.func @transform_2(%arg0: i32, %arg1: i32) -> (i32, i32) {
    %c0_i32 = arith.constant 0 : i32
    %c0_i32_0 = arith.constant 0 : i32
    %c0_i32_1 = arith.constant 0 : i32
    return %c0_i32, %c0_i32_0 : i32, i32
  }
  func.func @transform_3(%arg0: i32, %arg1: i32) -> (i32, i32, i32) {
    %c0_i32 = arith.constant 0 : i32
    %c0_i32_0 = arith.constant 0 : i32
    return %arg0, %c0_i32, %arg1 : i32, i32, i32
  }
}

</mosaic_0001>

<llo_original>
// kernel: tpu_custom_call.1
$region0: #{tpu_custom_call.1}
  #allocation0 [shape = 'u32[]', space=smem, size = 0x4, offset = 0x4, fixed_abs, tag = 'smem constant byte address 0x4 - core index']
  #allocation1 [shape = 'u32[72,128]{1,0:T(1,128)}', space=vmem, size = 0x9000, scoped, tag = 'internal scratch']
  %s0 = inlined_call_operand.hbm [shape: f32[1,256], index: 0, kind: input, shape index: {}]
  %s1 = inlined_call_operand.hbm [shape: f32[8,256], index: 1, kind: output, shape index: {}]
  %s2 = sld [smem:[#allocation0]]
  $region18: #{tpu_custom_call.1} parent=0
    _
  %s4 = ssub.s32 1, %s2
  %s5 = scalar_select 0, %s4, %s2
  $region1: #{tpu_custom_call.1} parent=0
    #allocation2 [shape = 'u8[1024]{0}', space=vmem, size = 0x400, scoped, tag = 'input window, operand 0, single buffered']
    #allocation3 [shape = 's32[1]{0}', space=sflag, size = 0x4, scoped, tag = 'scoped memory for tpu_custom_call.1']
    #allocation4 [shape = 's32[1]{0}', space=sflag, size = 0x4, scoped, tag = 'scoped memory for tpu_custom_call.1']
    #allocation5 [shape = 'u8[8192]{0}', space=vmem, size = 0x2000, scoped, tag = 'output window, operand 0, single buffered']
    %6 = vsyncpa [#allocation3], 0
    %7 = vsyncpa [#allocation4], 0
    // Predicated region
    $region2: #{tpu_custom_call.1} parent=1 // pred_check
      _
    $region3: #{tpu_custom_call.1} parent=1 // pred_check_branch
      %9 = sbr.rel (0) target = $region5
    $region4: #{tpu_custom_call.1} parent=1 // pred_region
      %11 = vsyncadd [#allocation3], 0
      %s13 = sshll.u32 %s0, 4
      %s14 = int_to_ptr.hbm [resolvable:$true] %s13
      %s15 = sshll.u32 [#allocation2], 4
      %s16 = int_to_ptr.vmem [resolvable:$true] %s15
      %18 = dma.hbm_to_vmem [thread:$0]  %s14, 32, %s16, [#allocation3]
    $region5: #{tpu_custom_call.1} parent=1 // pred_fallthru
      _
    // Predicated region
    $region6: #{tpu_custom_call.1} parent=1 // pred_check
      _
    $region7: #{tpu_custom_call.1} parent=1 // pred_check_branch
      %20 = sbr.rel (0) target = $region9
    $region8: #{tpu_custom_call.1} parent=1 // pred_region
      %22 = dma.done [#allocation3], 32
    $region9: #{tpu_custom_call.1} parent=1 // pred_fallthru
      _
    %v23 = vld [vmem:[#allocation2] sm:$0x3]
    %v25 = vperm.slane %v23, 0
    %v26 = vperm.slane %v23, 1
    %30 = vrot.lane.b32.xlu0 %v25, 256
    %v31 = vpop.permute.xlu0 %30
    %33 = vrot.lane.b32.xlu0 %v26, 256
    %v34 = vpop.permute.xlu0 %33
    %v35 = vlaneseq
    %v36 = vshrl.u32 %v35, 7
    %v37 = vlaneseq
    %v38 = vand.u32 %v37, 127
    %vm39 = vcmp.lt.s32.totalorder %v38, %v36
    %v40 = vsel %vm39, %v31, %v34
    %v41 = vsel %vm39, %v34, %v31
    %42 = vst [vmem:[#allocation5] sm:$0xff] %v41
    %43 = vst [vmem:[#allocation5 + $0x8] sm:$0xff] %v40
    // Predicated region
    $region10: #{tpu_custom_call.1} parent=1 // pred_check
      _
    $region11: #{tpu_custom_call.1} parent=1 // pred_check_branch
      %45 = sbr.rel (0) target = $region13
    $region12: #{tpu_custom_call.1} parent=1 // pred_region
      %47 = vsyncadd [#allocation4], 0
      %s49 = sshll.u32 [#allocation5], 4
      %s50 = int_to_ptr.vmem [resolvable:$true] %s49
      %s51 = sshll.u32 %s1, 4
      %s52 = int_to_ptr.hbm [resolvable:$true] %s51
      %54 = dma.vmem_to_hbm [thread:$0]  %s50, 256, %s52, [#allocation4]
    $region13: #{tpu_custom_call.1} parent=1 // pred_fallthru
      _
    // Predicated region
    $region14: #{tpu_custom_call.1} parent=1 // pred_check
      _
    $region15: #{tpu_custom_call.1} parent=1 // pred_check_branch
      %56 = sbr.rel (0) target = $region17
    $region16: #{tpu_custom_call.1} parent=1 // pred_region
      %58 = dma.done [#allocation4], 256
    $region17: #{tpu_custom_call.1} parent=1 // pred_fallthru
      _
    %59 = vsyncpa [#allocation3], 1
    %60 = vsyncpa [#allocation4], 1

// kernel: tpu_custom_call.1
$region0: #{tpu_custom_call.1}
  #allocation0 [shape = 'u32[]', space=smem, size = 0x4, offset = 0x4, fixed_abs, tag = 'smem constant byte address 0x4 - core index']
  #allocation1 [shape = 'u32[72,128]{1,0:T(1,128)}', space=vmem, size = 0x9000, scoped, tag = 'internal scratch']
  %s0 = inlined_call_operand.vmem [shape: bf16[2,1,3200], index: 0, kind: input, shape index: {}]
  %s1 = inlined_call_operand.vmem [shape: bf16[32,33], index: 1, kind: input, shape index: {}]
  %s2 = inlined_call_operand.hbm [shape: bf16[1024,256], index: 2, kind: input, shape index: {}]
  %s3 = inlined_call_operand.hbm [shape: f32[2,16,768], index: 3, kind: output, shape index: {}]
  %s4 = sld [smem:[#allocation0]]
  $region49: #{tpu_custom_call.1} parent=0
    _
  %s6 = ssub.s32 1, %s4
  %s7 = scalar_select 0, %s6, %s4
  $region1: #{tpu_custom_call.1} parent=0
    #allocation2 [shape = 'u8[524288]{0}', space=vmem, size = 0x80000, scoped, tag = 'input window, operand 2, single buffered']
    #allocation3 [shape = 's32[2]{0}', space=sflag, size = 0x8, scoped, tag = 'scoped memory for tpu_custom_call.1']
    #allocation4 [shape = 's32[2]{0}', space=sflag, size = 0x8, scoped, tag = 'scoped memory for tpu_custom_call.1']
    #allocation5 [shape = 'u8[32768]{0}', space=vmem, size = 0x8000, scoped, tag = 'output window, operand 0']
    %8 = vsyncpa [#allocation3], 0
    %9 = vsyncpa [#allocation4], 0
    %s10 = scalar_lea.sflag [#allocation4], 1
    %11 = vsyncpa %s10, 0
    loop: start=0, step=1, limit=8
    $region2: #{tpu_custom_call.1} parent=1 // loop_pre_header
      _
    $region3: #{tpu_custom_call.1} parent=1 // loop_header
      %s13 = sphi 0, %s17
      %p14 = scmp.ge.s32.totalorder %s13, 8
      %s20 = sphi 0, %s32
      %s21 = sphi 0, %s28
      %s22 = sphi 0, %s20
      %s23 = sphi 0, %s21
      %s24 = sphi 0, %s22
      %s25 = sphi 0, %s23
      %s35 = sphi 0, %s37
      %s38 = sphi 0, %s35
      %s39 = sphi 0, %s38
      %s55 = sphi 0, %s39
      %s59 = sphi 0, %s59
      %s61 = sphi 0, %s59
      %s62 = sphi 0, %s61
      %s76 = sphi 0, %s62
      %s80 = sphi 0, %s80
      %s82 = sphi 0, %s80
      %s83 = sphi 0, %s82
      %s97 = sphi 0, %s83
      %s105 = sphi 0, %s107
      %s108 = sphi 0, %s105
      %s109 = sphi 0, %s108
      %s125 = sphi 0, %s109
    $region4: #{tpu_custom_call.1} parent=1 // loop_header_branch
      %16 = sbr.rel (%p14) target = $region8
    $region5: #{tpu_custom_call.1} parent=1 // loop_body
      %s18 = ssub.s32 %s13, 1
      %s19 = ssub.s32 %s13, 2
      %s26 = sadd.s32 1, %s21
      %p27 = scmp.ge.s32.totalorder %s26, 3
      %s28 = scalar_select %p27, 0, %s26
      %s29 = sadd.s32 1, %s20
      %s30 = scalar_select %p27, %s29, %s20
      %p31 = scmp.ge.s32.totalorder %s30, 2
      %s32 = scalar_select %p31, 0, %s30
      %s33 = ssub.s32 %s20, %s32
      %p34 = scmp.eq.s32.totalorder %s33, 0
      %s36 = sadd.s32 %s35, 1
      %s37 = scalar_select %p34, %s35, %s36
      %p40 = pneg %p34
      %p41 = scmp.eq.s32.totalorder %s13, 5
      %p42 = por %p40, %p41
      %p43 = scmp.ne.s32.totalorder %s35, %s38
      %p44 = scmp.eq.s32.totalorder %s13, 0
      %p45 = por %p43, %p44
      %p46 = scmp.ne.s32.totalorder %s35, %s38
      %p47 = scmp.eq.s32.totalorder %s18, 5
      %p48 = por %p46, %p47
      %p49 = scmp.ne.s32.totalorder %s38, %s39
      %p50 = scmp.eq.s32.totalorder %s18, 0
      %p51 = por %p49, %p50
      %p52 = scmp.ne.s32.totalorder %s38, %s39
      %p53 = scmp.eq.s32.totalorder %s19, 5
      %p54 = por %p52, %p53
      %p56 = scmp.ne.s32.totalorder %s39, %s55
      %p57 = scmp.eq.s32.totalorder %s19, 0
      %p58 = por %p56, %p57
      %s60 = sadd.s32 %s59, 1
      %p63 = scmp.eq.s32.totalorder %s13, 5
      %p64 = scmp.ne.s32.totalorder %s59, %s61
      %p65 = scmp.eq.s32.totalorder %s13, 0
      %p66 = por %p64, %p65
      %p67 = scmp.ne.s32.totalorder %s59, %s61
      %p68 = scmp.eq.s32.totalorder %s18, 5
      %p69 = por %p67, %p68
      %p70 = scmp.ne.s32.totalorder %s61, %s62
      %p71 = scmp.eq.s32.totalorder %s18, 0
      %p72 = por %p70, %p71
      %p73 = scmp.ne.s32.totalorder %s61, %s62
      %p74 = scmp.eq.s32.totalorder %s19, 5
      %p75 = por %p73, %p74
      %p77 = scmp.ne.s32.totalorder %s62, %s76
      %p78 = scmp.eq.s32.totalorder %s19, 0
      %p79 = por %p77, %p78
      %s81 = sadd.s32 %s80, 1
      %p84 = scmp.eq.s32.totalorder %s13, 5
      %p85 = scmp.ne.s32.totalorder %s80, %s82
      %p86 = scmp.eq.s32.totalorder %s13, 0
      %p87 = por %p85, %p86
      %p88 = scmp.ne.s32.totalorder %s80, %s82
      %p89 = scmp.eq.s32.totalorder %s18, 5
      %p90 = por %p88, %p89
      %p91 = scmp.ne.s32.totalorder %s82, %s83
      %p92 = scmp.eq.s32.totalorder %s18, 0
      %p93 = por %p91, %p92
      %p94 = scmp.ne.s32.totalorder %s82, %s83
      %p95 = scmp.eq.s32.totalorder %s19, 5
      %p96 = por %p94, %p95
      %p98 = scmp.ne.s32.totalorder %s83, %s97
      %p99 = scmp.eq.s32.totalorder %s19, 0
      %p100 = por %p98, %p99
      %s101 = ssub.s32 %s20, %s32
      %s102 = ssub.s32 %s21, %s28
      %s103 = sor.u32 %s101, %s102
      %p104 = scmp.eq.s32.totalorder %s103, 0
      %s106 = sadd.s32 %s105, 1
      %s107 = scalar_select %p104, %s105, %s106
      %p110 = pneg %p104
      %p111 = scmp.eq.s32.totalorder %s13, 5
      %p112 = por %p110, %p111
      %p113 = scmp.ne.s32.totalorder %s105, %s108
      %p114 = scmp.eq.s32.totalorder %s13, 0
      %p115 = por %p113, %p114
      %p116 = scmp.ne.s32.totalorder %s105, %s108
      %p117 = scmp.eq.s32.totalorder %s18, 5
      %p118 = por %p116, %p117
      %p119 = scmp.ne.s32.totalorder %s108, %s109
      %p120 = scmp.eq.s32.totalorder %s18, 0
      %p121 = por %p119, %p120
      %p122 = scmp.ne.s32.totalorder %s108, %s109
      %p123 = scmp.eq.s32.totalorder %s19, 5
      %p124 = por %p122, %p123
      %p126 = scmp.ne.s32.totalorder %s109, %s125
      %p127 = scmp.eq.s32.totalorder %s19, 0
      %p128 = por %p126, %p127
      %p129 = scmp.le.s32.totalorder 1, %s13
      %p130 = scmp.lt.s32.totalorder %s13, 7
      %p131 = pnand %p129, %p130
      %p132 = pneg %p131
      // Predicated region
      $region9: #{tpu_custom_call.1} parent=5 // pred_check
        _
      $region10: #{tpu_custom_call.1} parent=5 // pred_check_branch
        %134 = sbr.rel (%p131) target = $region12
      $region11: #{tpu_custom_call.1} parent=5 // pred_region
        %s135 = ssub.s32 %s13, 1
        // Predicated region
        $region13: #{tpu_custom_call.1} parent=11 // pred_check
          %p136 = pneg %p72
        $region14: #{tpu_custom_call.1} parent=11 // pred_check_branch
          %138 = sbr.rel (%p136) target = $region16
        $region15: #{tpu_custom_call.1} parent=11 // pred_region
          _
        $region16: #{tpu_custom_call.1} parent=11 // pred_fallthru
          _
        // Predicated region
        $region17: #{tpu_custom_call.1} parent=11 // pred_check
          %p139 = pneg %p93
        $region18: #{tpu_custom_call.1} parent=11 // pred_check_branch
          %141 = sbr.rel (%p139) target = $region20
        $region19: #{tpu_custom_call.1} parent=11 // pred_region
          %143 = vsyncadd [#allocation3], 0
          %s144 = sshll.u32 %s2, 4
          %s145 = int_to_ptr.hbm [resolvable:$true] %s144
          %s146 = sshll.u32 [#allocation2], 4
          %s147 = int_to_ptr.vmem [resolvable:$true] %s146
          %152 = dma.hbm_to_vmem [thread:$0]  %s145, 16384, %s147, [#allocation3], 128, 128, 8
        $region20: #{tpu_custom_call.1} parent=11 // pred_fallthru
          _
      $region12: #{tpu_custom_call.1} parent=5 // pred_fallthru
        _
      %p153 = scmp.lt.s32.totalorder %s13, 6
      // Predicated region
      $region21: #{tpu_custom_call.1} parent=5 // pred_check
        %p154 = pneg %p153
      $region22: #{tpu_custom_call.1} parent=5 // pred_check_branch
        %156 = sbr.rel (%p154) target = $region24
      $region23: #{tpu_custom_call.1} parent=5 // pred_region
        // Predicated region
        $region25: #{tpu_custom_call.1} parent=23 // pred_check
          %p157 = pneg %p45
        $region26: #{tpu_custom_call.1} parent=23 // pred_check_branch
          %159 = sbr.rel (%p157) target = $region28
        $region27: #{tpu_custom_call.1} parent=23 // pred_region
          %p160 = scmp.lt.s32.totalorder %s20, 1
          %s161 = scalar_select %p160, %s20, 1
          %s162 = smul.addr %s161, 25
          %s163 = scalar_lea.vmem %s0, %s162
        $region28: #{tpu_custom_call.1} parent=23 // pred_fallthru
          _
      $region24: #{tpu_custom_call.1} parent=5 // pred_fallthru
        _
      %p164 = scmp.le.s32.totalorder 1, %s13
      %p165 = scmp.lt.s32.totalorder %s13, 7
      %p166 = pnand %p164, %p165
      %p167 = pneg %p166
      // Predicated region
      $region29: #{tpu_custom_call.1} parent=5 // pred_check
        _
      $region30: #{tpu_custom_call.1} parent=5 // pred_check_branch
        %169 = sbr.rel (%p166) target = $region32
      $region31: #{tpu_custom_call.1} parent=5 // pred_region
        %s170 = ssub.s32 %s13, 1
        // Predicated region
        $region33: #{tpu_custom_call.1} parent=31 // pred_check
          %p171 = pneg %p93
        $region34: #{tpu_custom_call.1} parent=31 // pred_check_branch
          %173 = sbr.rel (%p171) target = $region36
        $region35: #{tpu_custom_call.1} parent=31 // pred_region
          %175 = dma.done [#allocation3], 16384
        $region36: #{tpu_custom_call.1} parent=31 // pred_fallthru
          _
        %p176 = scmp.lt.s32.totalorder %s22, 1
        %s177 = scalar_select %p176, %s22, 1
        %s178 = smul.addr %s177, 25
        %s179 = scalar_lea.vmem %s0, %s178
        %p180 = pneg %p51
        %p181 = pneg %p48
        %p182 = pneg %p72
        %p183 = pneg %p69
        %p184 = pneg %p93
        %p185 = pneg %p90
        %p186 = pneg %p121
        %p187 = pneg %p118
        %s188 = sand.u32 %s108, 1
        %s189 = scalar_lea.sflag [#allocation4], %s188
        %s190 = sand.u32 %s108, 1
        %s191 = smul.addr %s190, 32
        %s192 = scalar_lea.vmem [#allocation5], %s191
        %p193 = scmp.lt.s32.totalorder %s22, 1
        %s194 = scalar_select %p193, %s22, 1
        %s195 = smul.addr %s194, 25
        %s196 = scalar_lea.vmem %s0, %s195
        %s197 = smul.u32 2, %s23
        %s199 = smul.u32 %s23, 1024
        %s200 = sshra.s32 %s199, 7
        %s201 = sand.u32 %s199, 127
        %s202 = scalar_lea.vmem %s196, %s200
        %v203 = vld [vmem:[%s202] sm:$0xff]
        %v204 = vld [vmem:[%s202 + $0x8] sm:$0x1]
        %v205 = vunpack.c.l.bf16 %v203
        %v206 = vunpack.c.h.bf16 %v203
        %v207 = vunpack.c.l.bf16 %v204
        %v210 = vperm.slane %v205, 0
        %v211 = vperm.slane %v205, 2
        %v212 = vperm.slane %v205, 4
        %v213 = vperm.slane %v205, 6
        %v214 = vperm.slane %v206, 0
        %v215 = vperm.slane %v206, 2
        %v216 = vperm.slane %v206, 4
        %v217 = vperm.slane %v206, 6
        %v227 = vperm.slane %v207, 0
        %228 = vrot.lane.b32.xlu0 %v210, 127
        %v229 = vpop.permute.xlu0 %228
        %230 = vrot.lane.b32.xlu0 %v211, 127
        %v231 = vpop.permute.xlu0 %230
        %232 = vrot.lane.b32.xlu0 %v212, 127
        %v233 = vpop.permute.xlu0 %232
        %234 = vrot.lane.b32.xlu0 %v213, 127
        %v235 = vpop.permute.xlu0 %234
        %236 = vrot.lane.b32.xlu0 %v214, 127
        %v237 = vpop.permute.xlu0 %236
        %238 = vrot.lane.b32.xlu0 %v215, 127
        %v239 = vpop.permute.xlu0 %238
        %240 = vrot.lane.b32.xlu0 %v216, 127
        %v241 = vpop.permute.xlu0 %240
        %242 = vrot.lane.b32.xlu0 %v217, 127
        %v243 = vpop.permute.xlu0 %242
        %244 = vrot.lane.b32.xlu0 %v227, 127
        %v245 = vpop.permute.xlu0 %244
        %vm246 = vcmask 1039360
        %v247 = vsel %vm246, %v229, %v231
        %v248 = vsel %vm246, %v231, %v233
        %v249 = vsel %vm246, %v233, %v235
        %v250 = vsel %vm246, %v235, %v237
        %v251 = vsel %vm246, %v237, %v239
        %v252 = vsel %vm246, %v239, %v241
        %v253 = vsel %vm246, %v241, %v243
        %v254 = vsel %vm246, %v243, %v245
        %263 = vrot.lane.b32.xlu0 %v210, 126
        %v264 = vpop.permute.xlu0 %263
        %265 = vrot.lane.b32.xlu0 %v211, 126
        %v266 = vpop.permute.xlu0 %265
        %267 = vrot.lane.b32.xlu0 %v212, 126
        %v268 = vpop.permute.xlu0 %267
        %269 = vrot.lane.b32.xlu0 %v213, 126
        %v270 = vpop.permute.xlu0 %269
        %271 = vrot.lane.b32.xlu0 %v214, 126
        %v272 = vpop.permute.xlu0 %271
        %273 = vrot.lane.b32.xlu0 %v215, 126
        %v274 = vpop.permute.xlu0 %273
        %275 = vrot.lane.b32.xlu0 %v216, 126
        %v276 = vpop.permute.xlu0 %275
        %277 = vrot.lane.b32.xlu0 %v217, 126
        %v278 = vpop.permute.xlu0 %277
        %279 = vrot.lane.b32.xlu0 %v227, 126
        %v280 = vpop.permute.xlu0 %279
        %vm281 = vcmask 1031168
        %v282 = vsel %vm281, %v264, %v266
        %v283 = vsel %vm281, %v266, %v268
        %v284 = vsel %vm281, %v268, %v270
        %v285 = vsel %vm281, %v270, %v272
        %v286 = vsel %vm281, %v272, %v274
        %v287 = vsel %vm281, %v274, %v276
        %v288 = vsel %vm281, %v276, %v278
        %v289 = vsel %vm281, %v278, %v280
        %298 = vrot.lane.b32.xlu0 %v210, 125
        %v299 = vpop.permute.xlu0 %298
        %300 = vrot.lane.b32.xlu0 %v211, 125
        %v301 = vpop.permute.xlu0 %300
        %302 = vrot.lane.b32.xlu0 %v212, 125
        %v303 = vpop.permute.xlu0 %302
        %304 = vrot.lane.b32.xlu0 %v213, 125
        %v305 = vpop.permute.xlu0 %304
        %306 = vrot.lane.b32.xlu0 %v214, 125
        %v307 = vpop.permute.xlu0 %306
        %308 = vrot.lane.b32.xlu0 %v215, 125
        %v309 = vpop.permute.xlu0 %308
        %310 = vrot.lane.b32.xlu0 %v216, 125
        %v311 = vpop.permute.xlu0 %310
        %312 = vrot.lane.b32.xlu0 %v217, 125
        %v313 = vpop.permute.xlu0 %312
        %314 = vrot.lane.b32.xlu0 %v227, 125
        %v315 = vpop.permute.xlu0 %314
        %vm316 = vcmask 1022976
        %v317 = vsel %vm316, %v299, %v301
        %v318 = vsel %vm316, %v301, %v303
        %v319 = vsel %vm316, %v303, %v305
        %v320 = vsel %vm316, %v305, %v307
        %v321 = vsel %vm316, %v307, %v309
        %v322 = vsel %vm316, %v309, %v311
        %v323 = vsel %vm316, %v311, %v313
        %v324 = vsel %vm316, %v313, %v315
        %333 = vrot.lane.b32.xlu0 %v210, 124
        %v334 = vpop.permute.xlu0 %333
        %335 = vrot.lane.b32.xlu0 %v211, 124
        %v336 = vpop.permute.xlu0 %335
        %337 = vrot.lane.b32.xlu0 %v212, 124
        %v338 = vpop.permute.xlu0 %337
        %339 = vrot.lane.b32.xlu0 %v213, 124
        %v340 = vpop.permute.xlu0 %339
        %341 = vrot.lane.b32.xlu0 %v214, 124
        %v342 = vpop.permute.xlu0 %341
        %343 = vrot.lane.b32.xlu0 %v215, 124
        %v344 = vpop.permute.xlu0 %343
        %345 = vrot.lane.b32.xlu0 %v216, 124
        %v346 = vpop.permute.xlu0 %345
        %347 = vrot.lane.b32.xlu0 %v217, 124
        %v348 = vpop.permute.xlu0 %347
        %349 = vrot.lane.b32.xlu0 %v227, 124
        %v350 = vpop.permute.xlu0 %349
        %vm351 = vcmask 1014784
        %v352 = vsel %vm351, %v334, %v336
        %v353 = vsel %vm351, %v336, %v338
        %v354 = vsel %vm351, %v338, %v340
        %v355 = vsel %vm351, %v340, %v342
        %v356 = vsel %vm351, %v342, %v344
        %v357 = vsel %vm351, %v344, %v346
        %v358 = vsel %vm351, %v346, %v348
        %v359 = vsel %vm351, %v348, %v350
        %368 = vrot.lane.b32.xlu0 %v210, 123
        %v369 = vpop.permute.xlu0 %368
        %370 = vrot.lane.b32.xlu0 %v211, 123
        %v371 = vpop.permute.xlu0 %370
        %372 = vrot.lane.b32.xlu0 %v212, 123
        %v373 = vpop.permute.xlu0 %372
        %374 = vrot.lane.b32.xlu0 %v213, 123
        %v375 = vpop.permute.xlu0 %374
        %376 = vrot.lane.b32.xlu0 %v214, 123
        %v377 = vpop.permute.xlu0 %376
        %378 = vrot.lane.b32.xlu0 %v215, 123
        %v379 = vpop.permute.xlu0 %378
        %380 = vrot.lane.b32.xlu0 %v216, 123
        %v381 = vpop.permute.xlu0 %380
        %382 = vrot.lane.b32.xlu0 %v217, 123
        %v383 = vpop.permute.xlu0 %382
        %384 = vrot.lane.b32.xlu0 %v227, 123
        %v385 = vpop.permute.xlu0 %384
        %vm386 = vcmask 1006592
        %v387 = vsel %vm386, %v369, %v371
        %v388 = vsel %vm386, %v371, %v373
        %v389 = vsel %vm386, %v373, %v375
        %v390 = vsel %vm386, %v375, %v377
        %v391 = vsel %vm386, %v377, %v379
        %v392 = vsel %vm386, %v379, %v381
        %v393 = vsel %vm386, %v381, %v383
        %v394 = vsel %vm386, %v383, %v385
        %403 = vrot.lane.b32.xlu0 %v210, 122
        %v404 = vpop.permute.xlu0 %403
        %405 = vrot.lane.b32.xlu0 %v211, 122
        %v406 = vpop.permute.xlu0 %405
        %407 = vrot.lane.b32.xlu0 %v212, 122
        %v408 = vpop.permute.xlu0 %407
        %409 = vrot.lane.b32.xlu0 %v213, 122
        %v410 = vpop.permute.xlu0 %409
        %411 = vrot.lane.b32.xlu0 %v214, 122
        %v412 = vpop.permute.xlu0 %411
        %413 = vrot.lane.b32.xlu0 %v215, 122
        %v414 = vpop.permute.xlu0 %413
        %415 = vrot.lane.b32.xlu0 %v216, 122
        %v416 = vpop.permute.xlu0 %415
        %417 = vrot.lane.b32.xlu0 %v217, 122
        %v418 = vpop.permute.xlu0 %417
        %419 = vrot.lane.b32.xlu0 %v227, 122
        %v420 = vpop.permute.xlu0 %419
        %vm421 = vcmask 998400
        %v422 = vsel %vm421, %v404, %v406
        %v423 = vsel %vm421, %v406, %v408
        %v424 = vsel %vm421, %v408, %v410
        %v425 = vsel %vm421, %v410, %v412
        %v426 = vsel %vm421, %v412, %v414
        %v427 = vsel %vm421, %v414, %v416
        %v428 = vsel %vm421, %v416, %v418
        %v429 = vsel %vm421, %v418, %v420
        %438 = vrot.lane.b32.xlu0 %v210, 121
        %v439 = vpop.permute.xlu0 %438
        %440 = vrot.lane.b32.xlu0 %v211, 121
        %v441 = vpop.permute.xlu0 %440
        %442 = vrot.lane.b32.xlu0 %v212, 121
        %v443 = vpop.permute.xlu0 %442
        %444 = vrot.lane.b32.xlu0 %v213, 121
        %v445 = vpop.permute.xlu0 %444
        %446 = vrot.lane.b32.xlu0 %v214, 121
        %v447 = vpop.permute.xlu0 %446
        %448 = vrot.lane.b32.xlu0 %v215, 121
        %v449 = vpop.permute.xlu0 %448
        %450 = vrot.lane.b32.xlu0 %v216, 121
        %v451 = vpop.permute.xlu0 %450
        %452 = vrot.lane.b32.xlu0 %v217, 121
        %v453 = vpop.permute.xlu0 %452
        %454 = vrot.lane.b32.xlu0 %v227, 121
        %v455 = vpop.permute.xlu0 %454
        %vm456 = vcmask 990208
        %v457 = vsel %vm456, %v439, %v441
        %v458 = vsel %vm456, %v441, %v443
        %v459 = vsel %vm456, %v443, %v445
        %v460 = vsel %vm456, %v445, %v447
        %v461 = vsel %vm456, %v447, %v449
        %v462 = vsel %vm456, %v449, %v451
        %v463 = vsel %vm456, %v451, %v453
        %v464 = vsel %vm456, %v453, %v455
        %473 = vrot.lane.b32.xlu0 %v210, 120
        %v474 = vpop.permute.xlu0 %473
        %475 = vrot.lane.b32.xlu0 %v211, 120
        %v476 = vpop.permute.xlu0 %475
        %477 = vrot.lane.b32.xlu0 %v212, 120
        %v478 = vpop.permute.xlu0 %477
        %479 = vrot.lane.b32.xlu0 %v213, 120
        %v480 = vpop.permute.xlu0 %479
        %481 = vrot.lane.b32.xlu0 %v214, 120
        %v482 = vpop.permute.xlu0 %481
        %483 = vrot.lane.b32.xlu0 %v215, 120
        %v484 = vpop.permute.xlu0 %483
        %485 = vrot.lane.b32.xlu0 %v216, 120
        %v486 = vpop.permute.xlu0 %485
        %487 = vrot.lane.b32.xlu0 %v217, 120
        %v488 = vpop.permute.xlu0 %487
        %489 = vrot.lane.b32.xlu0 %v227, 120
        %v490 = vpop.permute.xlu0 %489
        %vm491 = vcmask 982016
        %v492 = vsel %vm491, %v474, %v476
        %v493 = vsel %vm491, %v476, %v478
        %v494 = vsel %vm491, %v478, %v480
        %v495 = vsel %vm491, %v480, %v482
        %v496 = vsel %vm491, %v482, %v484
        %v497 = vsel %vm491, %v484, %v486
        %v498 = vsel %vm491, %v486, %v488
        %v499 = vsel %vm491, %v488, %v490
        %508 = vrot.lane.b32.xlu0 %v210, 119
        %v509 = vpop.permute.xlu0 %508
        %510 = vrot.lane.b32.xlu0 %v211, 119
        %v511 = vpop.permute.xlu0 %510
        %512 = vrot.lane.b32.xlu0 %v212, 119
        %v513 = vpop.permute.xlu0 %512
        %514 = vrot.lane.b32.xlu0 %v213, 119
        %v515 = vpop.permute.xlu0 %514
        %516 = vrot.lane.b32.xlu0 %v214, 119
        %v517 = vpop.permute.xlu0 %516
        %518 = vrot.lane.b32.xlu0 %v215, 119
        %v519 = vpop.permute.xlu0 %518
        %520 = vrot.lane.b32.xlu0 %v216, 119
        %v521 = vpop.permute.xlu0 %520
        %522 = vrot.lane.b32.xlu0 %v217, 119
        %v523 = vpop.permute.xlu0 %522
        %524 = vrot.lane.b32.xlu0 %v227, 119
        %v525 = vpop.permute.xlu0 %524
        %vm526 = vcmask 973824
        %v527 = vsel %vm526, %v509, %v511
        %v528 = vsel %vm526, %v511, %v513
        %v529 = vsel %vm526, %v513, %v515
        %v530 = vsel %vm526, %v515, %v517
        %v531 = vsel %vm526, %v517, %v519
        %v532 = vsel %vm526, %v519, %v521
        %v533 = vsel %vm526, %v521, %v523
        %v534 = vsel %vm526, %v523, %v525
        %543 = vrot.lane.b32.xlu0 %v210, 118
        %v544 = vpop.permute.xlu0 %543
        %545 = vrot.lane.b32.xlu0 %v211, 118
        %v546 = vpop.permute.xlu0 %545
        %547 = vrot.lane.b32.xlu0 %v212, 118
        %v548 = vpop.permute.xlu0 %547
        %549 = vrot.lane.b32.xlu0 %v213, 118
        %v550 = vpop.permute.xlu0 %549
        %551 = vrot.lane.b32.xlu0 %v214, 118
        %v552 = vpop.permute.xlu0 %551
        %553 = vrot.lane.b32.xlu0 %v215, 118
        %v554 = vpop.permute.xlu0 %553
        %555 = vrot.lane.b32.xlu0 %v216, 118
        %v556 = vpop.permute.xlu0 %555
        %557 = vrot.lane.b32.xlu0 %v217, 118
        %v558 = vpop.permute.xlu0 %557
        %559 = vrot.lane.b32.xlu0 %v227, 118
        %v560 = vpop.permute.xlu0 %559
        %vm561 = vcmask 965632
        %v562 = vsel %vm561, %v544, %v546
        %v563 = vsel %vm561, %v546, %v548
        %v564 = vsel %vm561, %v548, %v550
        %v565 = vsel %vm561, %v550, %v552
        %v566 = vsel %vm561, %v552, %v554
        %v567 = vsel %vm561, %v554, %v556
        %v568 = vsel %vm561, %v556, %v558
        %v569 = vsel %vm561, %v558, %v560
        %578 = vrot.lane.b32.xlu0 %v210, 117
        %v579 = vpop.permute.xlu0 %578
        %580 = vrot.lane.b32.xlu0 %v211, 117
        %v581 = vpop.permute.xlu0 %580
        %582 = vrot.lane.b32.xlu0 %v212, 117
        %v583 = vpop.permute.xlu0 %582
        %584 = vrot.lane.b32.xlu0 %v213, 117
        %v585 = vpop.permute.xlu0 %584
        %586 = vrot.lane.b32.xlu0 %v214, 117
        %v587 = vpop.permute.xlu0 %586
        %588 = vrot.lane.b32.xlu0 %v215, 117
        %v589 = vpop.permute.xlu0 %588
        %590 = vrot.lane.b32.xlu0 %v216, 117
        %v591 = vpop.permute.xlu0 %590
        %592 = vrot.lane.b32.xlu0 %v217, 117
        %v593 = vpop.permute.xlu0 %592
        %594 = vrot.lane.b32.xlu0 %v227, 117
        %v595 = vpop.permute.xlu0 %594
        %vm596 = vcmask 957440
        %v597 = vsel %vm596, %v579, %v581
        %v598 = vsel %vm596, %v581, %v583
        %v599 = vsel %vm596, %v583, %v585
        %v600 = vsel %vm596, %v585, %v587
        %v601 = vsel %vm596, %v587, %v589
        %v602 = vsel %vm596, %v589, %v591
        %v603 = vsel %vm596, %v591, %v593
        %v604 = vsel %vm596, %v593, %v595
        %613 = vrot.lane.b32.xlu0 %v210, 116
        %v614 = vpop.permute.xlu0 %613
        %615 = vrot.lane.b32.xlu0 %v211, 116
        %v616 = vpop.permute.xlu0 %615
        %617 = vrot.lane.b32.xlu0 %v212, 116
        %v618 = vpop.permute.xlu0 %617
        %619 = vrot.lane.b32.xlu0 %v213, 116
        %v620 = vpop.permute.xlu0 %619
        %621 = vrot.lane.b32.xlu0 %v214, 116
        %v622 = vpop.permute.xlu0 %621
        %623 = vrot.lane.b32.xlu0 %v215, 116
        %v624 = vpop.permute.xlu0 %623
        %625 = vrot.lane.b32.xlu0 %v216, 116
        %v626 = vpop.permute.xlu0 %625
        %627 = vrot.lane.b32.xlu0 %v217, 116
        %v628 = vpop.permute.xlu0 %627
        %629 = vrot.lane.b32.xlu0 %v227, 116
        %v630 = vpop.permute.xlu0 %629
        %vm631 = vcmask 949248
        %v632 = vsel %vm631, %v614, %v616
        %v633 = vsel %vm631, %v616, %v618
        %v634 = vsel %vm631, %v618, %v620
        %v635 = vsel %vm631, %v620, %v622
        %v636 = vsel %vm631, %v622, %v624
        %v637 = vsel %vm631, %v624, %v626
        %v638 = vsel %vm631, %v626, %v628
        %v639 = vsel %vm631, %v628, %v630
        %648 = vrot.lane.b32.xlu0 %v210, 115
        %v649 = vpop.permute.xlu0 %648
        %650 = vrot.lane.b32.xlu0 %v211, 115
        %v651 = vpop.permute.xlu0 %650
        %652 = vrot.lane.b32.xlu0 %v212, 115
        %v653 = vpop.permute.xlu0 %652
        %654 = vrot.lane.b32.xlu0 %v213, 115
        %v655 = vpop.permute.xlu0 %654
        %656 = vrot.lane.b32.xlu0 %v214, 115
        %v657 = vpop.permute.xlu0 %656
        %658 = vrot.lane.b32.xlu0 %v215, 115
        %v659 = vpop.permute.xlu0 %658
        %660 = vrot.lane.b32.xlu0 %v216, 115
        %v661 = vpop.permute.xlu0 %660
        %662 = vrot.lane.b32.xlu0 %v217, 115
        %v663 = vpop.permute.xlu0 %662
        %664 = vrot.lane.b32.xlu0 %v227, 115
        %v665 = vpop.permute.xlu0 %664
        %vm666 = vcmask 941056
        %v667 = vsel %vm666, %v649, %v651
        %v668 = vsel %vm666, %v651, %v653
        %v669 = vsel %vm666, %v653, %v655
        %v670 = vsel %vm666, %v655, %v657
        %v671 = vsel %vm666, %v657, %v659
        %v672 = vsel %vm666, %v659, %v661
        %v673 = vsel %vm666, %v661, %v663
        %v674 = vsel %vm666, %v663, %v665
        %683 = vrot.lane.b32.xlu0 %v210, 114
        %v684 = vpop.permute.xlu0 %683
        %685 = vrot.lane.b32.xlu0 %v211, 114
        %v686 = vpop.permute.xlu0 %685
        %687 = vrot.lane.b32.xlu0 %v212, 114
        %v688 = vpop.permute.xlu0 %687
        %689 = vrot.lane.b32.xlu0 %v213, 114
        %v690 = vpop.permute.xlu0 %689
        %691 = vrot.lane.b32.xlu0 %v214, 114
        %v692 = vpop.permute.xlu0 %691
        %693 = vrot.lane.b32.xlu0 %v215, 114
        %v694 = vpop.permute.xlu0 %693
        %695 = vrot.lane.b32.xlu0 %v216, 114
        %v696 = vpop.permute.xlu0 %695
        %697 = vrot.lane.b32.xlu0 %v217, 114
        %v698 = vpop.permute.xlu0 %697
        %699 = vrot.lane.b32.xlu0 %v227, 114
        %v700 = vpop.permute.xlu0 %699
        %vm701 = vcmask 932864
        %v702 = vsel %vm701, %v684, %v686
        %v703 = vsel %vm701, %v686, %v688
        %v704 = vsel %vm701, %v688, %v690
        %v705 = vsel %vm701, %v690, %v692
        %v706 = vsel %vm701, %v692, %v694
        %v707 = vsel %vm701, %v694, %v696
        %v708 = vsel %vm701, %v696, %v698
        %v709 = vsel %vm701, %v698, %v700
        %718 = vrot.lane.b32.xlu0 %v210, 113
        %v719 = vpop.permute.xlu0 %718
        %720 = vrot.lane.b32.xlu0 %v211, 113
        %v721 = vpop.permute.xlu0 %720
        %722 = vrot.lane.b32.xlu0 %v212, 113
        %v723 = vpop.permute.xlu0 %722
        %724 = vrot.lane.b32.xlu0 %v213, 113
        %v725 = vpop.permute.xlu0 %724
        %726 = vrot.lane.b32.xlu0 %v214, 113
        %v727 = vpop.permute.xlu0 %726
        %728 = vrot.lane.b32.xlu0 %v215, 113
        %v729 = vpop.permute.xlu0 %728
        %730 = vrot.lane.b32.xlu0 %v216, 113
        %v731 = vpop.permute.xlu0 %730
        %732 = vrot.lane.b32.xlu0 %v217, 113
        %v733 = vpop.permute.xlu0 %732
        %734 = vrot.lane.b32.xlu0 %v227, 113
        %v735 = vpop.permute.xlu0 %734
        %vm736 = vcmask 924672
        %v737 = vsel %vm736, %v719, %v721
        %v738 = vsel %vm736, %v721, %v723
        %v739 = vsel %vm736, %v723, %v725
        %v740 = vsel %vm736, %v725, %v727
        %v741 = vsel %vm736, %v727, %v729
        %v742 = vsel %vm736, %v729, %v731
        %v743 = vsel %vm736, %v731, %v733
        %v744 = vsel %vm736, %v733, %v735
        %vm753 = vcmask 1040384
        %v754 = vsel %vm753, %v210, %v247
        %v755 = vsel %vm753, %v211, %v248
        %v756 = vsel %vm753, %v212, %v249
        %v757 = vsel %vm753, %v213, %v250
        %v758 = vsel %vm753, %v214, %v251
        %v759 = vsel %vm753, %v215, %v252
        %v760 = vsel %vm753, %v216, %v253
        %v761 = vsel %vm753, %v217, %v254
        %vm762 = vcmask 1041408
        %v763 = vsel %vm762, %v754, %v282
        %v764 = vsel %vm762, %v755, %v283
        %v765 = vsel %vm762, %v756, %v284
        %v766 = vsel %vm762, %v757, %v285
        %v767 = vsel %vm762, %v758, %v286
        %v768 = vsel %vm762, %v759, %v287
        %v769 = vsel %vm762, %v760, %v288
        %v770 = vsel %vm762, %v761, %v289
        %vm771 = vcmask 1042432
        %v772 = vsel %vm771, %v763, %v317
        %v773 = vsel %vm771, %v764, %v318
        %v774 = vsel %vm771, %v765, %v319
        %v775 = vsel %vm771, %v766, %v320
        %v776 = vsel %vm771, %v767, %v321
        %v777 = vsel %vm771, %v768, %v322
        %v778 = vsel %vm771, %v769, %v323
        %v779 = vsel %vm771, %v770, %v324
        %vm780 = vcmask 1043456
        %v781 = vsel %vm780, %v772, %v352
        %v782 = vsel %vm780, %v773, %v353
        %v783 = vsel %vm780, %v774, %v354
        %v784 = vsel %vm780, %v775, %v355
        %v785 = vsel %vm780, %v776, %v356
        %v786 = vsel %vm780, %v777, %v357
        %v787 = vsel %vm780, %v778, %v358
        %v788 = vsel %vm780, %v779, %v359
        %vm789 = vcmask 1044480
        %v790 = vsel %vm789, %v781, %v387
        %v791 = vsel %vm789, %v782, %v388
        %v792 = vsel %vm789, %v783, %v389
        %v793 = vsel %vm789, %v784, %v390
        %v794 = vsel %vm789, %v785, %v391
        %v795 = vsel %vm789, %v786, %v392
        %v796 = vsel %vm789, %v787, %v393
        %v797 = vsel %vm789, %v788, %v394
        %vm798 = vcmask 1045504
        %v799 = vsel %vm798, %v790, %v422
        %v800 = vsel %vm798, %v791, %v423
        %v801 = vsel %vm798, %v792, %v424
        %v802 = vsel %vm798, %v793, %v425
        %v803 = vsel %vm798, %v794, %v426
        %v804 = vsel %vm798, %v795, %v427
        %v805 = vsel %vm798, %v796, %v428
        %v806 = vsel %vm798, %v797, %v429
        %vm807 = vcmask 1046528
        %v808 = vsel %vm807, %v799, %v457
        %v809 = vsel %vm807, %v800, %v458
        %v810 = vsel %vm807, %v801, %v459
        %v811 = vsel %vm807, %v802, %v460
        %v812 = vsel %vm807, %v803, %v461
        %v813 = vsel %vm807, %v804, %v462
        %v814 = vsel %vm807, %v805, %v463
        %v815 = vsel %vm807, %v806, %v464
        %v816 = vsel %vm753, %v492, %v527
        %v817 = vsel %vm753, %v493, %v528
        %v818 = vsel %vm753, %v494, %v529
        %v819 = vsel %vm753, %v495, %v530
        %v820 = vsel %vm753, %v496, %v531
        %v821 = vsel %vm753, %v497, %v532
        %v822 = vsel %vm753, %v498, %v533
        %v823 = vsel %vm753, %v499, %v534
        %v824 = vsel %vm762, %v816, %v562
        %v825 = vsel %vm762, %v817, %v563
        %v826 = vsel %vm762, %v818, %v564
        %v827 = vsel %vm762, %v819, %v565
        %v828 = vsel %vm762, %v820, %v566
        %v829 = vsel %vm762, %v821, %v567
        %v830 = vsel %vm762, %v822, %v568
        %v831 = vsel %vm762, %v823, %v569
        %v832 = vsel %vm771, %v824, %v597
        %v833 = vsel %vm771, %v825, %v598
        %v834 = vsel %vm771, %v826, %v599
        %v835 = vsel %vm771, %v827, %v600
        %v836 = vsel %vm771, %v828, %v601
        %v837 = vsel %vm771, %v829, %v602
        %v838 = vsel %vm771, %v830, %v603
        %v839 = vsel %vm771, %v831, %v604
        %v840 = vsel %vm780, %v832, %v632
        %v841 = vsel %vm780, %v833, %v633
        %v842 = vsel %vm780, %v834, %v634
        %v843 = vsel %vm780, %v835, %v635
        %v844 = vsel %vm780, %v836, %v636
        %v845 = vsel %vm780, %v837, %v637
        %v846 = vsel %vm780, %v838, %v638
        %v847 = vsel %vm780, %v839, %v639
        %v848 = vsel %vm789, %v840, %v667
        %v849 = vsel %vm789, %v841, %v668
        %v850 = vsel %vm789, %v842, %v669
        %v851 = vsel %vm789, %v843, %v670
        %v852 = vsel %vm789, %v844, %v671
        %v853 = vsel %vm789, %v845, %v672
        %v854 = vsel %vm789, %v846, %v673
        %v855 = vsel %vm789, %v847, %v674
        %v856 = vsel %vm798, %v848, %v702
        %v857 = vsel %vm798, %v849, %v703
        %v858 = vsel %vm798, %v850, %v704
        %v859 = vsel %vm798, %v851, %v705
        %v860 = vsel %vm798, %v852, %v706
        %v861 = vsel %vm798, %v853, %v707
        %v862 = vsel %vm798, %v854, %v708
        %v863 = vsel %vm798, %v855, %v709
        %v864 = vsel %vm807, %v856, %v737
        %v865 = vsel %vm807, %v857, %v738
        %v866 = vsel %vm807, %v858, %v739
        %v867 = vsel %vm807, %v859, %v740
        %v868 = vsel %vm807, %v860, %v741
        %v869 = vsel %vm807, %v861, %v742
        %v870 = vsel %vm807, %v862, %v743
        %v871 = vsel %vm807, %v863, %v744
        %v888 = vsel %vm753, %v227, %v245
        %v889 = vsel %vm762, %v888, %v280
        %v890 = vsel %vm771, %v889, %v315
        %v891 = vsel %vm780, %v890, %v350
        %v892 = vsel %vm789, %v891, %v385
        %v893 = vsel %vm798, %v892, %v420
        %v894 = vsel %vm807, %v893, %v455
        %v895 = vsel %vm753, %v490, %v525
        %v896 = vsel %vm762, %v895, %v560
        %v897 = vsel %vm771, %v896, %v595
        %v898 = vsel %vm780, %v897, %v630
        %v899 = vsel %vm789, %v898, %v665
        %v900 = vsel %vm798, %v899, %v700
        %v901 = vsel %vm807, %v900, %v735
        %920 = vrot.lane.b32.xlu0 %v808, 112
        %v921 = vpop.permute.xlu0 %920
        %922 = vrot.lane.b32.xlu0 %v809, 112
        %v923 = vpop.permute.xlu0 %922
        %924 = vrot.lane.b32.xlu0 %v810, 112
        %v925 = vpop.permute.xlu0 %924
        %926 = vrot.lane.b32.xlu0 %v811, 112
        %v927 = vpop.permute.xlu0 %926
        %928 = vrot.lane.b32.xlu0 %v812, 112
        %v929 = vpop.permute.xlu0 %928
        %930 = vrot.lane.b32.xlu0 %v813, 112
        %v931 = vpop.permute.xlu0 %930
        %932 = vrot.lane.b32.xlu0 %v814, 112
        %v933 = vpop.permute.xlu0 %932
        %934 = vrot.lane.b32.xlu0 %v815, 112
        %v935 = vpop.permute.xlu0 %934
        %936 = vrot.lane.b32.xlu0 %v894, 112
        %v937 = vpop.permute.xlu0 %936
        %938 = vrot.lane.b32.xlu0 %v864, 112
        %v939 = vpop.permute.xlu0 %938
        %940 = vrot.lane.b32.xlu0 %v865, 112
        %v941 = vpop.permute.xlu0 %940
        %942 = vrot.lane.b32.xlu0 %v866, 112
        %v943 = vpop.permute.xlu0 %942
        %944 = vrot.lane.b32.xlu0 %v867, 112
        %v945 = vpop.permute.xlu0 %944
        %946 = vrot.lane.b32.xlu0 %v868, 112
        %v947 = vpop.permute.xlu0 %946
        %948 = vrot.lane.b32.xlu0 %v869, 112
        %v949 = vpop.permute.xlu0 %948
        %950 = vrot.lane.b32.xlu0 %v870, 112
        %v951 = vpop.permute.xlu0 %950
        %952 = vrot.lane.b32.xlu0 %v871, 112
        %v953 = vpop.permute.xlu0 %952
        %954 = vrot.lane.b32.xlu0 %v901, 112
        %v955 = vpop.permute.xlu0 %954
        %vm956 = vcmask 916480
        %v957 = vsel %vm956, %v921, %v923
        %v958 = vsel %vm956, %v923, %v925
        %v959 = vsel %vm956, %v925, %v927
        %v960 = vsel %vm956, %v927, %v929
        %v961 = vsel %vm956, %v929, %v931
        %v962 = vsel %vm956, %v931, %v933
        %v963 = vsel %vm956, %v933, %v935
        %v964 = vsel %vm956, %v935, %v937
        %v965 = vsel %vm956, %v939, %v941
        %v966 = vsel %vm956, %v941, %v943
        %v967 = vsel %vm956, %v943, %v945
        %v968 = vsel %vm956, %v945, %v947
        %v969 = vsel %vm956, %v947, %v949
        %v970 = vsel %vm956, %v949, %v951
        %v971 = vsel %vm956, %v951, %v953
        %v972 = vsel %vm956, %v953, %v955
        %989 = vrot.lane.b32.xlu0 %v210, 96
        %v990 = vpop.permute.xlu0 %989
        %991 = vrot.lane.b32.xlu0 %v211, 96
        %v992 = vpop.permute.xlu0 %991
        %993 = vrot.lane.b32.xlu0 %v212, 96
        %v994 = vpop.permute.xlu0 %993
        %995 = vrot.lane.b32.xlu0 %v213, 96
        %v996 = vpop.permute.xlu0 %995
        %997 = vrot.lane.b32.xlu0 %v214, 96
        %v998 = vpop.permute.xlu0 %997
        %999 = vrot.lane.b32.xlu0 %v215, 96
        %v1000 = vpop.permute.xlu0 %999
        %1001 = vrot.lane.b32.xlu0 %v216, 96
        %v1002 = vpop.permute.xlu0 %1001
        %1003 = vrot.lane.b32.xlu0 %v217, 96
        %v1004 = vpop.permute.xlu0 %1003
        %1005 = vrot.lane.b32.xlu0 %v227, 96
        %v1006 = vpop.permute.xlu0 %1005
        %vm1007 = vcmask 785408
        %v1008 = vsel %vm1007, %v990, %v992
        %v1009 = vsel %vm1007, %v992, %v994
        %v1010 = vsel %vm1007, %v994, %v996
        %v1011 = vsel %vm1007, %v996, %v998
        %v1012 = vsel %vm1007, %v998, %v1000
        %v1013 = vsel %vm1007, %v1000, %v1002
        %v1014 = vsel %vm1007, %v1002, %v1004
        %v1015 = vsel %vm1007, %v1004, %v1006
        %v1024 = vld [vmem:[%s1] sm:$0xf]
        %v1025 = vld [vmem:[%s1 + $0x4] sm:$0xf]
        %v1026 = vld [vmem:[%s1 + $0x8] sm:$0xf]
        %v1027 = vld [vmem:[%s1 + $0xc] sm:$0xf]
        %v1028 = vpack.c.bf16 %v864, %v808
        %v1029 = vpack.c.bf16 %v865, %v809
        %v1030 = vpack.c.bf16 %v866, %v810
        %v1031 = vpack.c.bf16 %v867, %v811
        %v1032 = vpack.c.bf16 %v868, %v812
        %v1033 = vpack.c.bf16 %v869, %v813
        %v1034 = vpack.c.bf16 %v870, %v814
        %v1035 = vpack.c.bf16 %v871, %v815
        %v1036 = vpack.c.bf16 %v965, %v957
        %v1037 = vpack.c.bf16 %v966, %v958
        %v1038 = vpack.c.bf16 %v967, %v959
        %v1039 = vpack.c.bf16 %v968, %v960
        %v1040 = vpack.c.bf16 %v969, %v961
        %v1041 = vpack.c.bf16 %v970, %v962
        %v1042 = vpack.c.bf16 %v971, %v963
        %v1043 = vpack.c.bf16 %v972, %v964
        %v1044 = vpack.c.bf16 %v1008, %v1008
        %v1045 = vpack.c.bf16 %v1009, %v1009
        %v1046 = vpack.c.bf16 %v1010, %v1010
        %v1047 = vpack.c.bf16 %v1011, %v1011
        %v1048 = vpack.c.bf16 %v1012, %v1012
        %v1049 = vpack.c.bf16 %v1013, %v1013
        %v1050 = vpack.c.bf16 %v1014, %v1014
        %v1051 = vpack.c.bf16 %v1015, %v1015
        %v1056 = vunpack.c.l.b16 %v1024
        %v1057 = vunpack.c.l.b16 %v1025
        %v1058 = vunpack.c.l.b16 %v1026
        %v1059 = vunpack.c.l.b16 %v1027
        %v1060 = vpack.c.b16 %v1057, %v1056
        %v1061 = vpack.c.b16 %v1059, %v1058
        %vm1062 = vcmask 269312
        %v1064 = vsel %vm1062, %v1060, 0
        %v1067 = vsel %vm1062, %v1061, 0
        %v1069 = vsel 0, 4294967295, 65535
        %v1070 = vsel %vm753, %v1069, 0
        %v1072 = vand.u32 %v1044, %v1070
        %v1075 = vand.u32 %v1045, %v1070
        %v1078 = vand.u32 %v1046, %v1070
        %v1081 = vand.u32 %v1047, %v1070
        %v1084 = vand.u32 %v1048, %v1070
        %v1087 = vand.u32 %v1049, %v1070
        %v1090 = vand.u32 %v1050, %v1070
        %v1093 = vand.u32 %v1051, %v1070
        %1095 = vmatpush.bf16.msra.mxu0 0
        %1096 = vmatpush.bf16.msra.mxu0 0
        %1097 = vmatpush.bf16.msra.mxu0 0
        %1098 = vmatpush.bf16.msra.mxu0 0
        %1099 = vmatpush.bf16.msra.mxu0 0
        %1100 = vmatpush.bf16.msra.mxu0 %v1072
        %1101 = vmatpush.bf16.msra.mxu0 %v1036
        %1102 = vmatpush.bf16.msra.mxu0 %v1028
        %1103 = vmatmul.bf16.gmra.mxu0 %v1064
        %v1104 = vpop.f32.mrf.mxu0
        %v1105 = vadd.f32 0.0, %v1104
        %v1106 = vpop.f32.mrf.mxu0
        %v1107 = vadd.f32 0.0, %v1106
        %1108 = vmatmul.bf16.gmra.mxu0 %v1067
        %v1109 = vpop.f32.mrf.mxu0
        %v1110 = vadd.f32 0.0, %v1109
        %v1111 = vpop.f32.mrf.mxu0
        %v1112 = vadd.f32 0.0, %v1111
        %1113 = vdwg.mxu0
        %1114 = vmatpush.bf16.msra.mxu0 0
        %1115 = vmatpush.bf16.msra.mxu0 0
        %1116 = vmatpush.bf16.msra.mxu0 0
        %1117 = vmatpush.bf16.msra.mxu0 0
        %1118 = vmatpush.bf16.msra.mxu0 0
        %1119 = vmatpush.bf16.msra.mxu0 %v1075
        %1120 = vmatpush.bf16.msra.mxu0 %v1037
        %1121 = vmatpush.bf16.msra.mxu0 %v1029
        %1122 = vmatmul.bf16.gmra.mxu0 %v1064
        %v1123 = vpop.f32.mrf.mxu0
        %v1124 = vadd.f32 0.0, %v1123
        %v1125 = vpop.f32.mrf.mxu0
        %v1126 = vadd.f32 0.0, %v1125
        %1127 = vmatmul.bf16.gmra.mxu0 %v1067
        %v1128 = vpop.f32.mrf.mxu0
        %v1129 = vadd.f32 0.0, %v1128
        %v1130 = vpop.f32.mrf.mxu0
        %v1131 = vadd.f32 0.0, %v1130
        %1132 = vdwg.mxu0
        %1133 = vmatpush.bf16.msra.mxu0 0
        %1134 = vmatpush.bf16.msra.mxu0 0
        %1135 = vmatpush.bf16.msra.mxu0 0
        %1136 = vmatpush.bf16.msra.mxu0 0
        %1137 = vmatpush.bf16.msra.mxu0 0
        %1138 = vmatpush.bf16.msra.mxu0 %v1078
        %1139 = vmatpush.bf16.msra.mxu0 %v1038
        %1140 = vmatpush.bf16.msra.mxu0 %v1030
        %1141 = vmatmul.bf16.gmra.mxu0 %v1064
        %v1142 = vpop.f32.mrf.mxu0
        %v1143 = vadd.f32 0.0, %v1142
        %v1144 = vpop.f32.mrf.mxu0
        %v1145 = vadd.f32 0.0, %v1144
        %1146 = vmatmul.bf16.gmra.mxu0 %v1067
        %v1147 = vpop.f32.mrf.mxu0
        %v1148 = vadd.f32 0.0, %v1147
        %v1149 = vpop.f32.mrf.mxu0
        %v1150 = vadd.f32 0.0, %v1149
        %1151 = vdwg.mxu0
        %1152 = vmatpush.bf16.msra.mxu0 0
        %1153 = vmatpush.bf16.msra.mxu0 0
        %1154 = vmatpush.bf16.msra.mxu0 0
        %1155 = vmatpush.bf16.msra.mxu0 0
        %1156 = vmatpush.bf16.msra.mxu0 0
        %1157 = vmatpush.bf16.msra.mxu0 %v1081
        %1158 = vmatpush.bf16.msra.mxu0 %v1039
        %1159 = vmatpush.bf16.msra.mxu0 %v1031
        %1160 = vmatmul.bf16.gmra.mxu0 %v1064
        %v1161 = vpop.f32.mrf.mxu0
        %v1162 = vadd.f32 0.0, %v1161
        %v1163 = vpop.f32.mrf.mxu0
        %v1164 = vadd.f32 0.0, %v1163
        %1165 = vmatmul.bf16.gmra.mxu0 %v1067
        %v1166 = vpop.f32.mrf.mxu0
        %v1167 = vadd.f32 0.0, %v1166
        %v1168 = vpop.f32.mrf.mxu0
        %v1169 = vadd.f32 0.0, %v1168
        %1170 = vdwg.mxu0
        %1171 = vmatpush.bf16.msra.mxu0 0
        %1172 = vmatpush.bf16.msra.mxu0 0
        %1173 = vmatpush.bf16.msra.mxu0 0
        %1174 = vmatpush.bf16.msra.mxu0 0
        %1175 = vmatpush.bf16.msra.mxu0 0
        %1176 = vmatpush.bf16.msra.mxu0 %v1084
        %1177 = vmatpush.bf16.msra.mxu0 %v1040
        %1178 = vmatpush.bf16.msra.mxu0 %v1032
        %1179 = vmatmul.bf16.gmra.mxu0 %v1064
        %v1180 = vpop.f32.mrf.mxu0
        %v1181 = vadd.f32 0.0, %v1180
        %v1182 = vpop.f32.mrf.mxu0
        %v1183 = vadd.f32 0.0, %v1182
        %1184 = vmatmul.bf16.gmra.mxu0 %v1067
        %v1185 = vpop.f32.mrf.mxu0
        %v1186 = vadd.f32 0.0, %v1185
        %v1187 = vpop.f32.mrf.mxu0
        %v1188 = vadd.f32 0.0, %v1187
        %1189 = vdwg.mxu0
        %1190 = vmatpush.bf16.msra.mxu0 0
        %1191 = vmatpush.bf16.msra.mxu0 0
        %1192 = vmatpush.bf16.msra.mxu0 0
        %1193 = vmatpush.bf16.msra.mxu0 0
        %1194 = vmatpush.bf16.msra.mxu0 0
        %1195 = vmatpush.bf16.msra.mxu0 %v1087
        %1196 = vmatpush.bf16.msra.mxu0 %v1041
        %1197 = vmatpush.bf16.msra.mxu0 %v1033
        %1198 = vmatmul.bf16.gmra.mxu0 %v1064
        %v1199 = vpop.f32.mrf.mxu0
        %v1200 = vadd.f32 0.0, %v1199
        %v1201 = vpop.f32.mrf.mxu0
        %v1202 = vadd.f32 0.0, %v1201
        %1203 = vmatmul.bf16.gmra.mxu0 %v1067
        %v1204 = vpop.f32.mrf.mxu0
        %v1205 = vadd.f32 0.0, %v1204
        %v1206 = vpop.f32.mrf.mxu0
        %v1207 = vadd.f32 0.0, %v1206
        %1208 = vdwg.mxu0
        %1209 = vmatpush.bf16.msra.mxu0 0
        %1210 = vmatpush.bf16.msra.mxu0 0
        %1211 = vmatpush.bf16.msra.mxu0 0
        %1212 = vmatpush.bf16.msra.mxu0 0
        %1213 = vmatpush.bf16.msra.mxu0 0
        %1214 = vmatpush.bf16.msra.mxu0 %v1090
        %1215 = vmatpush.bf16.msra.mxu0 %v1042
        %1216 = vmatpush.bf16.msra.mxu0 %v1034
        %1217 = vmatmul.bf16.gmra.mxu0 %v1064
        %v1218 = vpop.f32.mrf.mxu0
        %v1219 = vadd.f32 0.0, %v1218
        %v1220 = vpop.f32.mrf.mxu0
        %v1221 = vadd.f32 0.0, %v1220
        %1222 = vmatmul.bf16.gmra.mxu0 %v1067
        %v1223 = vpop.f32.mrf.mxu0
        %v1224 = vadd.f32 0.0, %v1223
        %v1225 = vpop.f32.mrf.mxu0
        %v1226 = vadd.f32 0.0, %v1225
        %1227 = vdwg.mxu0
        %1228 = vmatpush.bf16.msra.mxu0 0
        %1229 = vmatpush.bf16.msra.mxu0 0
        %1230 = vmatpush.bf16.msra.mxu0 0
        %1231 = vmatpush.bf16.msra.mxu0 0
        %1232 = vmatpush.bf16.msra.mxu0 0
        %1233 = vmatpush.bf16.msra.mxu0 %v1093
        %1234 = vmatpush.bf16.msra.mxu0 %v1043
        %1235 = vmatpush.bf16.msra.mxu0 %v1035
        %1236 = vmatmul.bf16.gmra.mxu0 %v1064
        %v1237 = vpop.f32.mrf.mxu0
        %v1238 = vadd.f32 0.0, %v1237
        %v1239 = vpop.f32.mrf.mxu0
        %v1240 = vadd.f32 0.0, %v1239
        %1241 = vmatmul.bf16.gmra.mxu0 %v1067
        %v1242 = vpop.f32.mrf.mxu0
        %v1243 = vadd.f32 0.0, %v1242
        %v1244 = vpop.f32.mrf.mxu0
        %v1245 = vadd.f32 0.0, %v1244
        %1246 = vdwg.mxu0
        %v1247 = vmul.f32 %v1105, %v1105
        %v1248 = vmul.f32 %v1124, %v1124
        %v1249 = vmul.f32 %v1143, %v1143
        %v1250 = vmul.f32 %v1162, %v1162
        %v1251 = vmul.f32 %v1181, %v1181
        %v1252 = vmul.f32 %v1200, %v1200
        %v1253 = vmul.f32 %v1219, %v1219
        %v1254 = vmul.f32 %v1238, %v1238
        %v1255 = vmul.f32 %v1107, %v1107
        %v1256 = vmul.f32 %v1126, %v1126
        %v1257 = vmul.f32 %v1145, %v1145
        %v1258 = vmul.f32 %v1164, %v1164
        %v1259 = vmul.f32 %v1183, %v1183
        %v1260 = vmul.f32 %v1202, %v1202
        %v1261 = vmul.f32 %v1221, %v1221
        %v1262 = vmul.f32 %v1240, %v1240
        %v1263 = vmul.f32 %v1110, %v1110
        %v1264 = vmul.f32 %v1129, %v1129
        %v1265 = vmul.f32 %v1148, %v1148
        %v1266 = vmul.f32 %v1167, %v1167
        %v1267 = vmul.f32 %v1186, %v1186
        %v1268 = vmul.f32 %v1205, %v1205
        %v1269 = vmul.f32 %v1224, %v1224
        %v1270 = vmul.f32 %v1243, %v1243
        %v1271 = vmul.f32 %v1112, %v1112
        %v1272 = vmul.f32 %v1131, %v1131
        %v1273 = vmul.f32 %v1150, %v1150
        %v1274 = vmul.f32 %v1169, %v1169
        %v1275 = vmul.f32 %v1188, %v1188
        %v1276 = vmul.f32 %v1207, %v1207
        %v1277 = vmul.f32 %v1226, %v1226
        %v1278 = vmul.f32 %v1245, %v1245
        %v1279 = vadd.f32 %v1247, %v1263
        %v1280 = vadd.f32 %v1248, %v1264
        %v1281 = vadd.f32 %v1249, %v1265
        %v1282 = vadd.f32 %v1250, %v1266
        %v1283 = vadd.f32 %v1251, %v1267
        %v1284 = vadd.f32 %v1252, %v1268
        %v1285 = vadd.f32 %v1253, %v1269
        %v1286 = vadd.f32 %v1254, %v1270
        %v1287 = vadd.f32 %v1255, %v1271
        %v1288 = vadd.f32 %v1256, %v1272
        %v1289 = vadd.f32 %v1257, %v1273
        %v1290 = vadd.f32 %v1258, %v1274
        %v1291 = vadd.f32 %v1259, %v1275
        %v1292 = vadd.f32 %v1260, %v1276
        %v1293 = vadd.f32 %v1261, %v1277
        %v1294 = vadd.f32 %v1262, %v1278
        %v1295 = vrsqrt.pop %v1279
        %v1296 = vmul.f32 %v1295, %v1279
        %v1297 = vmul.f32 %v1296, %v1295
        %v1298 = vmul.f32 0.5, %v1297
        %v1299 = vsub.f32 1.5, %v1298
        %v1300 = vmul.f32 %v1295, %v1299
        %v1301 = vmul.f32 %v1279, %v1300
        %vm1302 = vcmp.eq.f32.partialorder %v1279, inf
        %v1303 = vsel %vm1302, %v1279, %v1301
        %vm1304 = vcmp.eq.f32.partialorder %v1279, 0.0
        %v1305 = vand.u32 %v1279, 2147483648
        %v1306 = vsel %vm1304, %v1305, %v1303
        %v1307 = vrsqrt.pop %v1280
        %v1308 = vmul.f32 %v1307, %v1280
        %v1309 = vmul.f32 %v1308, %v1307
        %v1310 = vmul.f32 0.5, %v1309
        %v1311 = vsub.f32 1.5, %v1310
        %v1312 = vmul.f32 %v1307, %v1311
        %v1313 = vmul.f32 %v1280, %v1312
        %vm1314 = vcmp.eq.f32.partialorder %v1280, inf
        %v1315 = vsel %vm1314, %v1280, %v1313
        %vm1316 = vcmp.eq.f32.partialorder %v1280, 0.0
        %v1317 = vand.u32 %v1280, 2147483648
        %v1318 = vsel %vm1316, %v1317, %v1315
        %v1319 = vrsqrt.pop %v1281
        %v1320 = vmul.f32 %v1319, %v1281
        %v1321 = vmul.f32 %v1320, %v1319
        %v1322 = vmul.f32 0.5, %v1321
        %v1323 = vsub.f32 1.5, %v1322
        %v1324 = vmul.f32 %v1319, %v1323
        %v1325 = vmul.f32 %v1281, %v1324
        %vm1326 = vcmp.eq.f32.partialorder %v1281, inf
        %v1327 = vsel %vm1326, %v1281, %v1325
        %vm1328 = vcmp.eq.f32.partialorder %v1281, 0.0
        %v1329 = vand.u32 %v1281, 2147483648
        %v1330 = vsel %vm1328, %v1329, %v1327
        %v1331 = vrsqrt.pop %v1282
        %v1332 = vmul.f32 %v1331, %v1282
        %v1333 = vmul.f32 %v1332, %v1331
        %v1334 = vmul.f32 0.5, %v1333
        %v1335 = vsub.f32 1.5, %v1334
        %v1336 = vmul.f32 %v1331, %v1335
        %v1337 = vmul.f32 %v1282, %v1336
        %vm1338 = vcmp.eq.f32.partialorder %v1282, inf
        %v1339 = vsel %vm1338, %v1282, %v1337
        %vm1340 = vcmp.eq.f32.partialorder %v1282, 0.0
        %v1341 = vand.u32 %v1282, 2147483648
        %v1342 = vsel %vm1340, %v1341, %v1339
        %v1343 = vrsqrt.pop %v1283
        %v1344 = vmul.f32 %v1343, %v1283
        %v1345 = vmul.f32 %v1344, %v1343
        %v1346 = vmul.f32 0.5, %v1345
        %v1347 = vsub.f32 1.5, %v1346
        %v1348 = vmul.f32 %v1343, %v1347
        %v1349 = vmul.f32 %v1283, %v1348
        %vm1350 = vcmp.eq.f32.partialorder %v1283, inf
        %v1351 = vsel %vm1350, %v1283, %v1349
        %vm1352 = vcmp.eq.f32.partialorder %v1283, 0.0
        %v1353 = vand.u32 %v1283, 2147483648
        %v1354 = vsel %vm1352, %v1353, %v1351
        %v1355 = vrsqrt.pop %v1284
        %v1356 = vmul.f32 %v1355, %v1284
        %v1357 = vmul.f32 %v1356, %v1355
        %v1358 = vmul.f32 0.5, %v1357
        %v1359 = vsub.f32 1.5, %v1358
        %v1360 = vmul.f32 %v1355, %v1359
        %v1361 = vmul.f32 %v1284, %v1360
        %vm1362 = vcmp.eq.f32.partialorder %v1284, inf
        %v1363 = vsel %vm1362, %v1284, %v1361
        %vm1364 = vcmp.eq.f32.partialorder %v1284, 0.0
        %v1365 = vand.u32 %v1284, 2147483648
        %v1366 = vsel %vm1364, %v1365, %v1363
        %v1367 = vrsqrt.pop %v1285
        %v1368 = vmul.f32 %v1367, %v1285
        %v1369 = vmul.f32 %v1368, %v1367
        %v1370 = vmul.f32 0.5, %v1369
        %v1371 = vsub.f32 1.5, %v1370
        %v1372 = vmul.f32 %v1367, %v1371
        %v1373 = vmul.f32 %v1285, %v1372
        %vm1374 = vcmp.eq.f32.partialorder %v1285, inf
        %v1375 = vsel %vm1374, %v1285, %v1373
        %vm1376 = vcmp.eq.f32.partialorder %v1285, 0.0
        %v1377 = vand.u32 %v1285, 2147483648
        %v1378 = vsel %vm1376, %v1377, %v1375
        %v1379 = vrsqrt.pop %v1286
        %v1380 = vmul.f32 %v1379, %v1286
        %v1381 = vmul.f32 %v1380, %v1379
        %v1382 = vmul.f32 0.5, %v1381
        %v1383 = vsub.f32 1.5, %v1382
        %v1384 = vmul.f32 %v1379, %v1383
        %v1385 = vmul.f32 %v1286, %v1384
        %vm1386 = vcmp.eq.f32.partialorder %v1286, inf
        %v1387 = vsel %vm1386, %v1286, %v1385
        %vm1388 = vcmp.eq.f32.partialorder %v1286, 0.0
        %v1389 = vand.u32 %v1286, 2147483648
        %v1390 = vsel %vm1388, %v1389, %v1387
        %v1391 = vrsqrt.pop %v1287
        %v1392 = vmul.f32 %v1391, %v1287
        %v1393 = vmul.f32 %v1392, %v1391
        %v1394 = vmul.f32 0.5, %v1393
        %v1395 = vsub.f32 1.5, %v1394
        %v1396 = vmul.f32 %v1391, %v1395
        %v1397 = vmul.f32 %v1287, %v1396
        %vm1398 = vcmp.eq.f32.partialorder %v1287, inf
        %v1399 = vsel %vm1398, %v1287, %v1397
        %vm1400 = vcmp.eq.f32.partialorder %v1287, 0.0
        %v1401 = vand.u32 %v1287, 2147483648
        %v1402 = vsel %vm1400, %v1401, %v1399
        %v1403 = vrsqrt.pop %v1288
        %v1404 = vmul.f32 %v1403, %v1288
        %v1405 = vmul.f32 %v1404, %v1403
        %v1406 = vmul.f32 0.5, %v1405
        %v1407 = vsub.f32 1.5, %v1406
        %v1408 = vmul.f32 %v1403, %v1407
        %v1409 = vmul.f32 %v1288, %v1408
        %vm1410 = vcmp.eq.f32.partialorder %v1288, inf
        %v1411 = vsel %vm1410, %v1288, %v1409
        %vm1412 = vcmp.eq.f32.partialorder %v1288, 0.0
        %v1413 = vand.u32 %v1288, 2147483648
        %v1414 = vsel %vm1412, %v1413, %v1411
        %v1415 = vrsqrt.pop %v1289
        %v1416 = vmul.f32 %v1415, %v1289
        %v1417 = vmul.f32 %v1416, %v1415
        %v1418 = vmul.f32 0.5, %v1417
        %v1419 = vsub.f32 1.5, %v1418
        %v1420 = vmul.f32 %v1415, %v1419
        %v1421 = vmul.f32 %v1289, %v1420
        %vm1422 = vcmp.eq.f32.partialorder %v1289, inf
        %v1423 = vsel %vm1422, %v1289, %v1421
        %vm1424 = vcmp.eq.f32.partialorder %v1289, 0.0
        %v1425 = vand.u32 %v1289, 2147483648
        %v1426 = vsel %vm1424, %v1425, %v1423
        %v1427 = vrsqrt.pop %v1290
        %v1428 = vmul.f32 %v1427, %v1290
        %v1429 = vmul.f32 %v1428, %v1427
        %v1430 = vmul.f32 0.5, %v1429
        %v1431 = vsub.f32 1.5, %v1430
        %v1432 = vmul.f32 %v1427, %v1431
        %v1433 = vmul.f32 %v1290, %v1432
        %vm1434 = vcmp.eq.f32.partialorder %v1290, inf
        %v1435 = vsel %vm1434, %v1290, %v1433
        %vm1436 = vcmp.eq.f32.partialorder %v1290, 0.0
        %v1437 = vand.u32 %v1290, 2147483648
        %v1438 = vsel %vm1436, %v1437, %v1435
        %v1439 = vrsqrt.pop %v1291
        %v1440 = vmul.f32 %v1439, %v1291
        %v1441 = vmul.f32 %v1440, %v1439
        %v1442 = vmul.f32 0.5, %v1441
        %v1443 = vsub.f32 1.5, %v1442
        %v1444 = vmul.f32 %v1439, %v1443
        %v1445 = vmul.f32 %v1291, %v1444
        %vm1446 = vcmp.eq.f32.partialorder %v1291, inf
        %v1447 = vsel %vm1446, %v1291, %v1445
        %vm1448 = vcmp.eq.f32.partialorder %v1291, 0.0
        %v1449 = vand.u32 %v1291, 2147483648
        %v1450 = vsel %vm1448, %v1449, %v1447
        %v1451 = vrsqrt.pop %v1292
        %v1452 = vmul.f32 %v1451, %v1292
        %v1453 = vmul.f32 %v1452, %v1451
        %v1454 = vmul.f32 0.5, %v1453
        %v1455 = vsub.f32 1.5, %v1454
        %v1456 = vmul.f32 %v1451, %v1455
        %v1457 = vmul.f32 %v1292, %v1456
        %vm1458 = vcmp.eq.f32.partialorder %v1292, inf
        %v1459 = vsel %vm1458, %v1292, %v1457
        %vm1460 = vcmp.eq.f32.partialorder %v1292, 0.0
        %v1461 = vand.u32 %v1292, 2147483648
        %v1462 = vsel %vm1460, %v1461, %v1459
        %v1463 = vrsqrt.pop %v1293
        %v1464 = vmul.f32 %v1463, %v1293
        %v1465 = vmul.f32 %v1464, %v1463
        %v1466 = vmul.f32 0.5, %v1465
        %v1467 = vsub.f32 1.5, %v1466
        %v1468 = vmul.f32 %v1463, %v1467
        %v1469 = vmul.f32 %v1293, %v1468
        %vm1470 = vcmp.eq.f32.partialorder %v1293, inf
        %v1471 = vsel %vm1470, %v1293, %v1469
        %vm1472 = vcmp.eq.f32.partialorder %v1293, 0.0
        %v1473 = vand.u32 %v1293, 2147483648
        %v1474 = vsel %vm1472, %v1473, %v1471
        %v1475 = vrsqrt.pop %v1294
        %v1476 = vmul.f32 %v1475, %v1294
        %v1477 = vmul.f32 %v1476, %v1475
        %v1478 = vmul.f32 0.5, %v1477
        %v1479 = vsub.f32 1.5, %v1478
        %v1480 = vmul.f32 %v1475, %v1479
        %v1481 = vmul.f32 %v1294, %v1480
        %vm1482 = vcmp.eq.f32.partialorder %v1294, inf
        %v1483 = vsel %vm1482, %v1294, %v1481
        %vm1484 = vcmp.eq.f32.partialorder %v1294, 0.0
        %v1485 = vand.u32 %v1294, 2147483648
        %v1486 = vsel %vm1484, %v1485, %v1483
        %v1487 = vlaneseq
        %v1488 = vand.u32 %v1487, 127
        %v1489 = vadd.s32 %v1488, 128
        %v1490 = vadd.s32 %v1488, 256
        %v1491 = vadd.s32 %v1488, 384
        %v1492 = vadd.s32 %v1488, 512
        %v1493 = vadd.s32 %v1488, 640
        %v1494 = vadd.s32 %v1488, 768
        %v1495 = vadd.s32 %v1488, 896
        %v1496 = vstv %s199
        %v1497 = vadd.s32 %v1496, %v1488
        %v1498 = vadd.s32 %v1496, %v1489
        %v1499 = vadd.s32 %v1496, %v1490
        %v1500 = vadd.s32 %v1496, %v1491
        %v1501 = vadd.s32 %v1496, %v1492
        %v1502 = vadd.s32 %v1496, %v1493
        %v1503 = vadd.s32 %v1496, %v1494
        %v1504 = vadd.s32 %v1496, %v1495
        %vm1505 = vcmp.lt.s32.totalorder %v1497, 2050
        %vm1506 = vcmp.lt.s32.totalorder %v1498, 2050
        %vm1507 = vcmp.lt.s32.totalorder %v1499, 2050
        %vm1508 = vcmp.lt.s32.totalorder %v1500, 2050
        %vm1509 = vcmp.lt.s32.totalorder %v1501, 2050
        %vm1510 = vcmp.lt.s32.totalorder %v1502, 2050
        %vm1511 = vcmp.lt.s32.totalorder %v1503, 2050
        %vm1512 = vcmp.lt.s32.totalorder %v1504, 2050
        %v1513 = vsel %vm1505, 1, 0
        %v1514 = vsel %vm1506, 1, 0
        %v1515 = vsel %vm1507, 1, 0
        %v1516 = vsel %vm1508, 1, 0
        %v1517 = vsel %vm1509, 1, 0
        %v1518 = vsel %vm1510, 1, 0
        %v1519 = vsel %vm1511, 1, 0
        %v1520 = vsel %vm1512, 1, 0
        %vm1521 = vcmp.eq.s32.totalorder %v1513, 1
        %vm1522 = vcmp.eq.s32.totalorder %v1514, 1
        %vm1523 = vcmp.eq.s32.totalorder %v1515, 1
        %vm1524 = vcmp.eq.s32.totalorder %v1516, 1
        %vm1525 = vcmp.eq.s32.totalorder %v1517, 1
        %vm1526 = vcmp.eq.s32.totalorder %v1518, 1
        %vm1527 = vcmp.eq.s32.totalorder %v1519, 1
        %vm1528 = vcmp.eq.s32.totalorder %v1520, 1
        %v1529 = vsel %vm1521, %v1306, 0.0
        %v1530 = vsel %vm1522, %v1318, 0.0
        %v1531 = vsel %vm1523, %v1330, 0.0
        %v1532 = vsel %vm1524, %v1342, 0.0
        %v1533 = vsel %vm1525, %v1354, 0.0
        %v1534 = vsel %vm1526, %v1366, 0.0
        %v1535 = vsel %vm1527, %v1378, 0.0
        %v1536 = vsel %vm1528, %v1390, 0.0
        %v1537 = vsel %vm1521, %v1402, 0.0
        %v1538 = vsel %vm1522, %v1414, 0.0
        %v1539 = vsel %vm1523, %v1426, 0.0
        %v1540 = vsel %vm1524, %v1438, 0.0
        %v1541 = vsel %vm1525, %v1450, 0.0
        %v1542 = vsel %vm1526, %v1462, 0.0
        %v1543 = vsel %vm1527, %v1474, 0.0
        %v1544 = vsel %vm1528, %v1486, 0.0
        %v1545 = vpack.c.bf16 %v1537, %v1529
        %v1546 = vpack.c.bf16 %v1538, %v1530
        %v1547 = vpack.c.bf16 %v1539, %v1531
        %v1548 = vpack.c.bf16 %v1540, %v1532
        %v1549 = vpack.c.bf16 %v1541, %v1533
        %v1550 = vpack.c.bf16 %v1542, %v1534
        %v1551 = vpack.c.bf16 %v1543, %v1535
        %v1552 = vpack.c.bf16 %v1544, %v1536
        %v1553 = vld [vmem:[#allocation2] sm:$0xff]
        %v1554 = vld [vmem:[#allocation2 + $0x8] sm:$0xff]
        %v1555 = vld [vmem:[#allocation2 + $0x10] sm:$0xff]
        %v1556 = vld [vmem:[#allocation2 + $0x18] sm:$0xff]
        %v1557 = vld [vmem:[#allocation2 + $0x20] sm:$0xff]
        %v1558 = vld [vmem:[#allocation2 + $0x28] sm:$0xff]
        %v1559 = vld [vmem:[#allocation2 + $0x30] sm:$0xff]
        %v1560 = vld [vmem:[#allocation2 + $0x38] sm:$0xff]
        %v1561 = vld [vmem:[#allocation2 + $0x40] sm:$0xff]
        %v1562 = vld [vmem:[#allocation2 + $0x48] sm:$0xff]
        %v1563 = vld [vmem:[#allocation2 + $0x50] sm:$0xff]
        %v1564 = vld [vmem:[#allocation2 + $0x58] sm:$0xff]
        %v1565 = vld [vmem:[#allocation2 + $0x60] sm:$0xff]
        %v1566 = vld [vmem:[#allocation2 + $0x68] sm:$0xff]
        %v1567 = vld [vmem:[#allocation2 + $0x70] sm:$0xff]
        %v1568 = vld [vmem:[#allocation2 + $0x78] sm:$0xff]
        %v1569 = vld [vmem:[#allocation2 + $0x80] sm:$0xff]
        %v1570 = vld [vmem:[#allocation2 + $0x88] sm:$0xff]
        %v1571 = vld [vmem:[#allocation2 + $0x90] sm:$0xff]
        %v1572 = vld [vmem:[#allocation2 + $0x98] sm:$0xff]
        %v1573 = vld [vmem:[#allocation2 + $0xa0] sm:$0xff]
        %v1574 = vld [vmem:[#allocation2 + $0xa8] sm:$0xff]
        %v1575 = vld [vmem:[#allocation2 + $0xb0] sm:$0xff]
        %v1576 = vld [vmem:[#allocation2 + $0xb8] sm:$0xff]
        %v1577 = vld [vmem:[#allocation2 + $0xc0] sm:$0xff]
        %v1578 = vld [vmem:[#allocation2 + $0xc8] sm:$0xff]
        %v1579 = vld [vmem:[#allocation2 + $0xd0] sm:$0xff]
        %v1580 = vld [vmem:[#allocation2 + $0xd8] sm:$0xff]
        %v1581 = vld [vmem:[#allocation2 + $0xe0] sm:$0xff]
        %v1582 = vld [vmem:[#allocation2 + $0xe8] sm:$0xff]
        %v1583 = vld [vmem:[#allocation2 + $0xf0] sm:$0xff]
        %v1584 = vld [vmem:[#allocation2 + $0xf8] sm:$0xff]
        %v1585 = vld [vmem:[#allocation2 + $0x100] sm:$0xff]
        %v1586 = vld [vmem:[#allocation2 + $0x108] sm:$0xff]
        %v1587 = vld [vmem:[#allocation2 + $0x110] sm:$0xff]
        %v1588 = vld [vmem:[#allocation2 + $0x118] sm:$0xff]
        %v1589 = vld [vmem:[#allocation2 + $0x120] sm:$0xff]
        %v1590 = vld [vmem:[#allocation2 + $0x128] sm:$0xff]
        %v1591 = vld [vmem:[#allocation2 + $0x130] sm:$0xff]
        %v1592 = vld [vmem:[#allocation2 + $0x138] sm:$0xff]
        %v1593 = vld [vmem:[#allocation2 + $0x140] sm:$0xff]
        %v1594 = vld [vmem:[#allocation2 + $0x148] sm:$0xff]
        %v1595 = vld [vmem:[#allocation2 + $0x150] sm:$0xff]
        %v1596 = vld [vmem:[#allocation2 + $0x158] sm:$0xff]
        %v1597 = vld [vmem:[#allocation2 + $0x160] sm:$0xff]
        %v1598 = vld [vmem:[#allocation2 + $0x168] sm:$0xff]
        %v1599 = vld [vmem:[#allocation2 + $0x170] sm:$0xff]
        %v1600 = vld [vmem:[#allocation2 + $0x178] sm:$0xff]
        %v1601 = vld [vmem:[#allocation2 + $0x180] sm:$0xff]
        %v1602 = vld [vmem:[#allocation2 + $0x188] sm:$0xff]
        %v1603 = vld [vmem:[#allocation2 + $0x190] sm:$0xff]
        %v1604 = vld [vmem:[#allocation2 + $0x198] sm:$0xff]
        %v1605 = vld [vmem:[#allocation2 + $0x1a0] sm:$0xff]
        %v1606 = vld [vmem:[#allocation2 + $0x1a8] sm:$0xff]
        %v1607 = vld [vmem:[#allocation2 + $0x1b0] sm:$0xff]
        %v1608 = vld [vmem:[#allocation2 + $0x1b8] sm:$0xff]
        %v1609 = vld [vmem:[#allocation2 + $0x1c0] sm:$0xff]
        %v1610 = vld [vmem:[#allocation2 + $0x1c8] sm:$0xff]
        %v1611 = vld [vmem:[#allocation2 + $0x1d0] sm:$0xff]
        %v1612 = vld [vmem:[#allocation2 + $0x1d8] sm:$0xff]
        %v1613 = vld [vmem:[#allocation2 + $0x1e0] sm:$0xff]
        %v1614 = vld [vmem:[#allocation2 + $0x1e8] sm:$0xff]
        %v1615 = vld [vmem:[#allocation2 + $0x1f0] sm:$0xff]
        %v1616 = vld [vmem:[#allocation2 + $0x1f8] sm:$0xff]
        %v1617 = vld [vmem:[#allocation2 + $0x200] sm:$0xff]
        %v1618 = vld [vmem:[#allocation2 + $0x208] sm:$0xff]
        %v1619 = vld [vmem:[#allocation2 + $0x210] sm:$0xff]
        %v1620 = vld [vmem:[#allocation2 + $0x218] sm:$0xff]
        %v1621 = vld [vmem:[#allocation2 + $0x220] sm:$0xff]
        %v1622 = vld [vmem:[#allocation2 + $0x228] sm:$0xff]
        %v1623 = vld [vmem:[#allocation2 + $0x230] sm:$0xff]
        %v1624 = vld [vmem:[#allocation2 + $0x238] sm:$0xff]
        %v1625 = vld [vmem:[#allocation2 + $0x240] sm:$0xff]
        %v1626 = vld [vmem:[#allocation2 + $0x248] sm:$0xff]
        %v1627 = vld [vmem:[#allocation2 + $0x250] sm:$0xff]
        %v1628 = vld [vmem:[#allocation2 + $0x258] sm:$0xff]
        %v1629 = vld [vmem:[#allocation2 + $0x260] sm:$0xff]
        %v1630 = vld [vmem:[#allocation2 + $0x268] sm:$0xff]
        %v1631 = vld [vmem:[#allocation2 + $0x270] sm:$0xff]
        %v1632 = vld [vmem:[#allocation2 + $0x278] sm:$0xff]
        %v1633 = vld [vmem:[#allocation2 + $0x280] sm:$0xff]
        %v1634 = vld [vmem:[#allocation2 + $0x288] sm:$0xff]
        %v1635 = vld [vmem:[#allocation2 + $0x290] sm:$0xff]
        %v1636 = vld [vmem:[#allocation2 + $0x298] sm:$0xff]
        %v1637 = vld [vmem:[#allocation2 + $0x2a0] sm:$0xff]
        %v1638 = vld [vmem:[#allocation2 + $0x2a8] sm:$0xff]
        %v1639 = vld [vmem:[#allocation2 + $0x2b0] sm:$0xff]
        %v1640 = vld [vmem:[#allocation2 + $0x2b8] sm:$0xff]
        %v1641 = vld [vmem:[#allocation2 + $0x2c0] sm:$0xff]
        %v1642 = vld [vmem:[#allocation2 + $0x2c8] sm:$0xff]
        %v1643 = vld [vmem:[#allocation2 + $0x2d0] sm:$0xff]
        %v1644 = vld [vmem:[#allocation2 + $0x2d8] sm:$0xff]
        %v1645 = vld [vmem:[#allocation2 + $0x2e0] sm:$0xff]
        %v1646 = vld [vmem:[#allocation2 + $0x2e8] sm:$0xff]
        %v1647 = vld [vmem:[#allocation2 + $0x2f0] sm:$0xff]
        %v1648 = vld [vmem:[#allocation2 + $0x2f8] sm:$0xff]
        %v1649 = vld [vmem:[#allocation2 + $0x300] sm:$0xff]
        %v1650 = vld [vmem:[#allocation2 + $0x308] sm:$0xff]
        %v1651 = vld [vmem:[#allocation2 + $0x310] sm:$0xff]
        %v1652 = vld [vmem:[#allocation2 + $0x318] sm:$0xff]
        %v1653 = vld [vmem:[#allocation2 + $0x320] sm:$0xff]
        %v1654 = vld [vmem:[#allocation2 + $0x328] sm:$0xff]
        %v1655 = vld [vmem:[#allocation2 + $0x330] sm:$0xff]
        %v1656 = vld [vmem:[#allocation2 + $0x338] sm:$0xff]
        %v1657 = vld [vmem:[#allocation2 + $0x340] sm:$0xff]
        %v1658 = vld [vmem:[#allocation2 + $0x348] sm:$0xff]
        %v1659 = vld [vmem:[#allocation2 + $0x350] sm:$0xff]
        %v1660 = vld [vmem:[#allocation2 + $0x358] sm:$0xff]
        %v1661 = vld [vmem:[#allocation2 + $0x360] sm:$0xff]
        %v1662 = vld [vmem:[#allocation2 + $0x368] sm:$0xff]
        %v1663 = vld [vmem:[#allocation2 + $0x370] sm:$0xff]
        %v1664 = vld [vmem:[#allocation2 + $0x378] sm:$0xff]
        %v1665 = vld [vmem:[#allocation2 + $0x380] sm:$0xff]
        %v1666 = vld [vmem:[#allocation2 + $0x388] sm:$0xff]
        %v1667 = vld [vmem:[#allocation2 + $0x390] sm:$0xff]
        %v1668 = vld [vmem:[#allocation2 + $0x398] sm:$0xff]
        %v1669 = vld [vmem:[#allocation2 + $0x3a0] sm:$0xff]
        %v1670 = vld [vmem:[#allocation2 + $0x3a8] sm:$0xff]
        %v1671 = vld [vmem:[#allocation2 + $0x3b0] sm:$0xff]
        %v1672 = vld [vmem:[#allocation2 + $0x3b8] sm:$0xff]
        %v1673 = vld [vmem:[#allocation2 + $0x3c0] sm:$0xff]
        %v1674 = vld [vmem:[#allocation2 + $0x3c8] sm:$0xff]
        %v1675 = vld [vmem:[#allocation2 + $0x3d0] sm:$0xff]
        %v1676 = vld [vmem:[#allocation2 + $0x3d8] sm:$0xff]
        %v1677 = vld [vmem:[#allocation2 + $0x3e0] sm:$0xff]
        %v1678 = vld [vmem:[#allocation2 + $0x3e8] sm:$0xff]
        %v1679 = vld [vmem:[#allocation2 + $0x3f0] sm:$0xff]
        %v1680 = vld [vmem:[#allocation2 + $0x3f8] sm:$0xff]
        %v1809 = vunpack.c.l.b16 %v1553
        %v1810 = vunpack.c.h.b16 %v1553
        %v1811 = vunpack.c.l.b16 %v1554
        %v1812 = vunpack.c.h.b16 %v1554
        %v1813 = vunpack.c.l.b16 %v1555
        %v1814 = vunpack.c.h.b16 %v1555
        %v1815 = vunpack.c.l.b16 %v1556
        %v1816 = vunpack.c.h.b16 %v1556
        %v1817 = vunpack.c.l.b16 %v1557
        %v1818 = vunpack.c.h.b16 %v1557
        %v1819 = vunpack.c.l.b16 %v1558
        %v1820 = vunpack.c.h.b16 %v1558
        %v1821 = vunpack.c.l.b16 %v1559
        %v1822 = vunpack.c.h.b16 %v1559
        %v1823 = vunpack.c.l.b16 %v1560
        %v1824 = vunpack.c.h.b16 %v1560
        %v1825 = vunpack.c.l.b16 %v1561
        %v1826 = vunpack.c.h.b16 %v1561
        %v1827 = vunpack.c.l.b16 %v1562
        %v1828 = vunpack.c.h.b16 %v1562
        %v1829 = vunpack.c.l.b16 %v1563
        %v1830 = vunpack.c.h.b16 %v1563
        %v1831 = vunpack.c.l.b16 %v1564
        %v1832 = vunpack.c.h.b16 %v1564
        %v1833 = vunpack.c.l.b16 %v1565
        %v1834 = vunpack.c.h.b16 %v1565
        %v1835 = vunpack.c.l.b16 %v1566
        %v1836 = vunpack.c.h.b16 %v1566
        %v1837 = vunpack.c.l.b16 %v1567
        %v1838 = vunpack.c.h.b16 %v1567
        %v1839 = vunpack.c.l.b16 %v1568
        %v1840 = vunpack.c.h.b16 %v1568
        %v1841 = vunpack.c.l.b16 %v1569
        %v1842 = vunpack.c.h.b16 %v1569
        %v1843 = vunpack.c.l.b16 %v1570
        %v1844 = vunpack.c.h.b16 %v1570
        %v1845 = vunpack.c.l.b16 %v1571
        %v1846 = vunpack.c.h.b16 %v1571
        %v1847 = vunpack.c.l.b16 %v1572
        %v1848 = vunpack.c.h.b16 %v1572
        %v1849 = vunpack.c.l.b16 %v1573
        %v1850 = vunpack.c.h.b16 %v1573
        %v1851 = vunpack.c.l.b16 %v1574
        %v1852 = vunpack.c.h.b16 %v1574
        %v1853 = vunpack.c.l.b16 %v1575
        %v1854 = vunpack.c.h.b16 %v1575
        %v1855 = vunpack.c.l.b16 %v1576
        %v1856 = vunpack.c.h.b16 %v1576
        %v1857 = vunpack.c.l.b16 %v1577
        %v1858 = vunpack.c.h.b16 %v1577
        %v1859 = vunpack.c.l.b16 %v1578
        %v1860 = vunpack.c.h.b16 %v1578
        %v1861 = vunpack.c.l.b16 %v1579
        %v1862 = vunpack.c.h.b16 %v1579
        %v1863 = vunpack.c.l.b16 %v1580
        %v1864 = vunpack.c.h.b16 %v1580
        %v1865 = vunpack.c.l.b16 %v1581
        %v1866 = vunpack.c.h.b16 %v1581
        %v1867 = vunpack.c.l.b16 %v1582
        %v1868 = vunpack.c.h.b16 %v1582
        %v1869 = vunpack.c.l.b16 %v1583
        %v1870 = vunpack.c.h.b16 %v1583
        %v1871 = vunpack.c.l.b16 %v1584
        %v1872 = vunpack.c.h.b16 %v1584
        %v1873 = vunpack.c.l.b16 %v1585
        %v1874 = vunpack.c.h.b16 %v1585
        %v1875 = vunpack.c.l.b16 %v1586
        %v1876 = vunpack.c.h.b16 %v1586
        %v1877 = vunpack.c.l.b16 %v1587
        %v1878 = vunpack.c.h.b16 %v1587
        %v1879 = vunpack.c.l.b16 %v1588
        %v1880 = vunpack.c.h.b16 %v1588
        %v1881 = vunpack.c.l.b16 %v1589
        %v1882 = vunpack.c.h.b16 %v1589
        %v1883 = vunpack.c.l.b16 %v1590
        %v1884 = vunpack.c.h.b16 %v1590
        %v1885 = vunpack.c.l.b16 %v1591
        %v1886 = vunpack.c.h.b16 %v1591
        %v1887 = vunpack.c.l.b16 %v1592
        %v1888 = vunpack.c.h.b16 %v1592
        %v1889 = vunpack.c.l.b16 %v1593
        %v1890 = vunpack.c.h.b16 %v1593
        %v1891 = vunpack.c.l.b16 %v1594
        %v1892 = vunpack.c.h.b16 %v1594
        %v1893 = vunpack.c.l.b16 %v1595
        %v1894 = vunpack.c.h.b16 %v1595
        %v1895 = vunpack.c.l.b16 %v1596
        %v1896 = vunpack.c.h.b16 %v1596
        %v1897 = vunpack.c.l.b16 %v1597
        %v1898 = vunpack.c.h.b16 %v1597
        %v1899 = vunpack.c.l.b16 %v1598
        %v1900 = vunpack.c.h.b16 %v1598
        %v1901 = vunpack.c.l.b16 %v1599
        %v1902 = vunpack.c.h.b16 %v1599
        %v1903 = vunpack.c.l.b16 %v1600
        %v1904 = vunpack.c.h.b16 %v1600
        %v1905 = vunpack.c.l.b16 %v1601
        %v1906 = vunpack.c.h.b16 %v1601
        %v1907 = vunpack.c.l.b16 %v1602
        %v1908 = vunpack.c.h.b16 %v1602
        %v1909 = vunpack.c.l.b16 %v1603
        %v1910 = vunpack.c.h.b16 %v1603
        %v1911 = vunpack.c.l.b16 %v1604
        %v1912 = vunpack.c.h.b16 %v1604
        %v1913 = vunpack.c.l.b16 %v1605
        %v1914 = vunpack.c.h.b16 %v1605
        %v1915 = vunpack.c.l.b16 %v1606
        %v1916 = vunpack.c.h.b16 %v1606
        %v1917 = vunpack.c.l.b16 %v1607
        %v1918 = vunpack.c.h.b16 %v1607
        %v1919 = vunpack.c.l.b16 %v1608
        %v1920 = vunpack.c.h.b16 %v1608
        %v1921 = vunpack.c.l.b16 %v1609
        %v1922 = vunpack.c.h.b16 %v1609
        %v1923 = vunpack.c.l.b16 %v1610
        %v1924 = vunpack.c.h.b16 %v1610
        %v1925 = vunpack.c.l.b16 %v1611
        %v1926 = vunpack.c.h.b16 %v1611
        %v1927 = vunpack.c.l.b16 %v1612
        %v1928 = vunpack.c.h.b16 %v1612
        %v1929 = vunpack.c.l.b16 %v1613
        %v1930 = vunpack.c.h.b16 %v1613
        %v1931 = vunpack.c.l.b16 %v1614
        %v1932 = vunpack.c.h.b16 %v1614
        %v1933 = vunpack.c.l.b16 %v1615
        %v1934 = vunpack.c.h.b16 %v1615
        %v1935 = vunpack.c.l.b16 %v1616
        %v1936 = vunpack.c.h.b16 %v1616
        %v1937 = vunpack.c.l.b16 %v1617
        %v1938 = vunpack.c.h.b16 %v1617
        %v1939 = vunpack.c.l.b16 %v1618
        %v1940 = vunpack.c.h.b16 %v1618
        %v1941 = vunpack.c.l.b16 %v1619
        %v1942 = vunpack.c.h.b16 %v1619
        %v1943 = vunpack.c.l.b16 %v1620
        %v1944 = vunpack.c.h.b16 %v1620
        %v1945 = vunpack.c.l.b16 %v1621
        %v1946 = vunpack.c.h.b16 %v1621
        %v1947 = vunpack.c.l.b16 %v1622
        %v1948 = vunpack.c.h.b16 %v1622
        %v1949 = vunpack.c.l.b16 %v1623
        %v1950 = vunpack.c.h.b16 %v1623
        %v1951 = vunpack.c.l.b16 %v1624
        %v1952 = vunpack.c.h.b16 %v1624
        %v1953 = vunpack.c.l.b16 %v1625
        %v1954 = vunpack.c.h.b16 %v1625
        %v1955 = vunpack.c.l.b16 %v1626
        %v1956 = vunpack.c.h.b16 %v1626
        %v1957 = vunpack.c.l.b16 %v1627
        %v1958 = vunpack.c.h.b16 %v1627
        %v1959 = vunpack.c.l.b16 %v1628
        %v1960 = vunpack.c.h.b16 %v1628
        %v1961 = vunpack.c.l.b16 %v1629
        %v1962 = vunpack.c.h.b16 %v1629
        %v1963 = vunpack.c.l.b16 %v1630
        %v1964 = vunpack.c.h.b16 %v1630
        %v1965 = vunpack.c.l.b16 %v1631
        %v1966 = vunpack.c.h.b16 %v1631
        %v1967 = vunpack.c.l.b16 %v1632
        %v1968 = vunpack.c.h.b16 %v1632
        %v1969 = vunpack.c.l.b16 %v1633
        %v1970 = vunpack.c.h.b16 %v1633
        %v1971 = vunpack.c.l.b16 %v1634
        %v1972 = vunpack.c.h.b16 %v1634
        %v1973 = vunpack.c.l.b16 %v1635
        %v1974 = vunpack.c.h.b16 %v1635
        %v1975 = vunpack.c.l.b16 %v1636
        %v1976 = vunpack.c.h.b16 %v1636
        %v1977 = vunpack.c.l.b16 %v1637
        %v1978 = vunpack.c.h.b16 %v1637
        %v1979 = vunpack.c.l.b16 %v1638
        %v1980 = vunpack.c.h.b16 %v1638
        %v1981 = vunpack.c.l.b16 %v1639
        %v1982 = vunpack.c.h.b16 %v1639
        %v1983 = vunpack.c.l.b16 %v1640
        %v1984 = vunpack.c.h.b16 %v1640
        %v1985 = vunpack.c.l.b16 %v1641
        %v1986 = vunpack.c.h.b16 %v1641
        %v1987 = vunpack.c.l.b16 %v1642
        %v1988 = vunpack.c.h.b16 %v1642
        %v1989 = vunpack.c.l.b16 %v1643
        %v1990 = vunpack.c.h.b16 %v1643
        %v1991 = vunpack.c.l.b16 %v1644
        %v1992 = vunpack.c.h.b16 %v1644
        %v1993 = vunpack.c.l.b16 %v1645
        %v1994 = vunpack.c.h.b16 %v1645
        %v1995 = vunpack.c.l.b16 %v1646
        %v1996 = vunpack.c.h.b16 %v1646
        %v1997 = vunpack.c.l.b16 %v1647
        %v1998 = vunpack.c.h.b16 %v1647
        %v1999 = vunpack.c.l.b16 %v1648
        %v2000 = vunpack.c.h.b16 %v1648
        %v2001 = vunpack.c.l.b16 %v1649
        %v2002 = vunpack.c.h.b16 %v1649
        %v2003 = vunpack.c.l.b16 %v1650
        %v2004 = vunpack.c.h.b16 %v1650
        %v2005 = vunpack.c.l.b16 %v1651
        %v2006 = vunpack.c.h.b16 %v1651
        %v2007 = vunpack.c.l.b16 %v1652
        %v2008 = vunpack.c.h.b16 %v1652
        %v2009 = vunpack.c.l.b16 %v1653
        %v2010 = vunpack.c.h.b16 %v1653
        %v2011 = vunpack.c.l.b16 %v1654
        %v2012 = vunpack.c.h.b16 %v1654
        %v2013 = vunpack.c.l.b16 %v1655
        %v2014 = vunpack.c.h.b16 %v1655
        %v2015 = vunpack.c.l.b16 %v1656
        %v2016 = vunpack.c.h.b16 %v1656
        %v2017 = vunpack.c.l.b16 %v1657
        %v2018 = vunpack.c.h.b16 %v1657
        %v2019 = vunpack.c.l.b16 %v1658
        %v2020 = vunpack.c.h.b16 %v1658
        %v2021 = vunpack.c.l.b16 %v1659
        %v2022 = vunpack.c.h.b16 %v1659
        %v2023 = vunpack.c.l.b16 %v1660
        %v2024 = vunpack.c.h.b16 %v1660
        %v2025 = vunpack.c.l.b16 %v1661
        %v2026 = vunpack.c.h.b16 %v1661
        %v2027 = vunpack.c.l.b16 %v1662
        %v2028 = vunpack.c.h.b16 %v1662
        %v2029 = vunpack.c.l.b16 %v1663
        %v2030 = vunpack.c.h.b16 %v1663
        %v2031 = vunpack.c.l.b16 %v1664
        %v2032 = vunpack.c.h.b16 %v1664
        %v2033 = vunpack.c.l.b16 %v1665
        %v2034 = vunpack.c.h.b16 %v1665
        %v2035 = vunpack.c.l.b16 %v1666
        %v2036 = vunpack.c.h.b16 %v1666
        %v2037 = vunpack.c.l.b16 %v1667
        %v2038 = vunpack.c.h.b16 %v1667
        %v2039 = vunpack.c.l.b16 %v1668
        %v2040 = vunpack.c.h.b16 %v1668
        %v2041 = vunpack.c.l.b16 %v1669
        %v2042 = vunpack.c.h.b16 %v1669
        %v2043 = vunpack.c.l.b16 %v1670
        %v2044 = vunpack.c.h.b16 %v1670
        %v2045 = vunpack.c.l.b16 %v1671
        %v2046 = vunpack.c.h.b16 %v1671
        %v2047 = vunpack.c.l.b16 %v1672
        %v2048 = vunpack.c.h.b16 %v1672
        %v2049 = vunpack.c.l.b16 %v1673
        %v2050 = vunpack.c.h.b16 %v1673
        %v2051 = vunpack.c.l.b16 %v1674
        %v2052 = vunpack.c.h.b16 %v1674
        %v2053 = vunpack.c.l.b16 %v1675
        %v2054 = vunpack.c.h.b16 %v1675
        %v2055 = vunpack.c.l.b16 %v1676
        %v2056 = vunpack.c.h.b16 %v1676
        %v2057 = vunpack.c.l.b16 %v1677
        %v2058 = vunpack.c.h.b16 %v1677
        %v2059 = vunpack.c.l.b16 %v1678
        %v2060 = vunpack.c.h.b16 %v1678
        %v2061 = vunpack.c.l.b16 %v1679
        %v2062 = vunpack.c.h.b16 %v1679
        %v2063 = vunpack.c.l.b16 %v1680
        %v2064 = vunpack.c.h.b16 %v1680
        %v2065 = vpack.c.b16 %v1811, %v1809
        %v2066 = vpack.c.b16 %v1812, %v1810
        %v2067 = vpack.c.b16 %v1815, %v1813
        %v2068 = vpack.c.b16 %v1816, %v1814
        %v2069 = vpack.c.b16 %v1819, %v1817
        %v2070 = vpack.c.b16 %v1820, %v1818
        %v2071 = vpack.c.b16 %v1823, %v1821
        %v2072 = vpack.c.b16 %v1824, %v1822
        %v2073 = vpack.c.b16 %v1827, %v1825
        %v2074 = vpack.c.b16 %v1828, %v1826
        %v2075 = vpack.c.b16 %v1831, %v1829
        %v2076 = vpack.c.b16 %v1832, %v1830
        %v2077 = vpack.c.b16 %v1835, %v1833
        %v2078 = vpack.c.b16 %v1836, %v1834
        %v2079 = vpack.c.b16 %v1839, %v1837
        %v2080 = vpack.c.b16 %v1840, %v1838
        %v2081 = vpack.c.b16 %v1843, %v1841
        %v2082 = vpack.c.b16 %v1844, %v1842
        %v2083 = vpack.c.b16 %v1847, %v1845
        %v2084 = vpack.c.b16 %v1848, %v1846
        %v2085 = vpack.c.b16 %v1851, %v1849
        %v2086 = vpack.c.b16 %v1852, %v1850
        %v2087 = vpack.c.b16 %v1855, %v1853
        %v2088 = vpack.c.b16 %v1856, %v1854
        %v2089 = vpack.c.b16 %v1859, %v1857
        %v2090 = vpack.c.b16 %v1860, %v1858
        %v2091 = vpack.c.b16 %v1863, %v1861
        %v2092 = vpack.c.b16 %v1864, %v1862
        %v2093 = vpack.c.b16 %v1867, %v1865
        %v2094 = vpack.c.b16 %v1868, %v1866
        %v2095 = vpack.c.b16 %v1871, %v1869
        %v2096 = vpack.c.b16 %v1872, %v1870
        %v2097 = vpack.c.b16 %v1875, %v1873
        %v2098 = vpack.c.b16 %v1876, %v1874
        %v2099 = vpack.c.b16 %v1879, %v1877
        %v2100 = vpack.c.b16 %v1880, %v1878
        %v2101 = vpack.c.b16 %v1883, %v1881
        %v2102 = vpack.c.b16 %v1884, %v1882
        %v2103 = vpack.c.b16 %v1887, %v1885
        %v2104 = vpack.c.b16 %v1888, %v1886
        %v2105 = vpack.c.b16 %v1891, %v1889
        %v2106 = vpack.c.b16 %v1892, %v1890
        %v2107 = vpack.c.b16 %v1895, %v1893
        %v2108 = vpack.c.b16 %v1896, %v1894
        %v2109 = vpack.c.b16 %v1899, %v1897
        %v2110 = vpack.c.b16 %v1900, %v1898
        %v2111 = vpack.c.b16 %v1903, %v1901
        %v2112 = vpack.c.b16 %v1904, %v1902
        %v2113 = vpack.c.b16 %v1907, %v1905
        %v2114 = vpack.c.b16 %v1908, %v1906
        %v2115 = vpack.c.b16 %v1911, %v1909
        %v2116 = vpack.c.b16 %v1912, %v1910
        %v2117 = vpack.c.b16 %v1915, %v1913
        %v2118 = vpack.c.b16 %v1916, %v1914
        %v2119 = vpack.c.b16 %v1919, %v1917
        %v2120 = vpack.c.b16 %v1920, %v1918
        %v2121 = vpack.c.b16 %v1923, %v1921
        %v2122 = vpack.c.b16 %v1924, %v1922
        %v2123 = vpack.c.b16 %v1927, %v1925
        %v2124 = vpack.c.b16 %v1928, %v1926
        %v2125 = vpack.c.b16 %v1931, %v1929
        %v2126 = vpack.c.b16 %v1932, %v1930
        %v2127 = vpack.c.b16 %v1935, %v1933
        %v2128 = vpack.c.b16 %v1936, %v1934
        %v2129 = vpack.c.b16 %v1939, %v1937
        %v2130 = vpack.c.b16 %v1940, %v1938
        %v2131 = vpack.c.b16 %v1943, %v1941
        %v2132 = vpack.c.b16 %v1944, %v1942
        %v2133 = vpack.c.b16 %v1947, %v1945
        %v2134 = vpack.c.b16 %v1948, %v1946
        %v2135 = vpack.c.b16 %v1951, %v1949
        %v2136 = vpack.c.b16 %v1952, %v1950
        %v2137 = vpack.c.b16 %v1955, %v1953
        %v2138 = vpack.c.b16 %v1956, %v1954
        %v2139 = vpack.c.b16 %v1959, %v1957
        %v2140 = vpack.c.b16 %v1960, %v1958
        %v2141 = vpack.c.b16 %v1963, %v1961
        %v2142 = vpack.c.b16 %v1964, %v1962
        %v2143 = vpack.c.b16 %v1967, %v1965
        %v2144 = vpack.c.b16 %v1968, %v1966
        %v2145 = vpack.c.b16 %v1971, %v1969
        %v2146 = vpack.c.b16 %v1972, %v1970
        %v2147 = vpack.c.b16 %v1975, %v1973
        %v2148 = vpack.c.b16 %v1976, %v1974
        %v2149 = vpack.c.b16 %v1979, %v1977
        %v2150 = vpack.c.b16 %v1980, %v1978
        %v2151 = vpack.c.b16 %v1983, %v1981
        %v2152 = vpack.c.b16 %v1984, %v1982
        %v2153 = vpack.c.b16 %v1987, %v1985
        %v2154 = vpack.c.b16 %v1988, %v1986
        %v2155 = vpack.c.b16 %v1991, %v1989
        %v2156 = vpack.c.b16 %v1992, %v1990
        %v2157 = vpack.c.b16 %v1995, %v1993
        %v2158 = vpack.c.b16 %v1996, %v1994
        %v2159 = vpack.c.b16 %v1999, %v1997
        %v2160 = vpack.c.b16 %v2000, %v1998
        %v2161 = vpack.c.b16 %v2003, %v2001
        %v2162 = vpack.c.b16 %v2004, %v2002
        %v2163 = vpack.c.b16 %v2007, %v2005
        %v2164 = vpack.c.b16 %v2008, %v2006
        %v2165 = vpack.c.b16 %v2011, %v2009
        %v2166 = vpack.c.b16 %v2012, %v2010
        %v2167 = vpack.c.b16 %v2015, %v2013
        %v2168 = vpack.c.b16 %v2016, %v2014
        %v2169 = vpack.c.b16 %v2019, %v2017
        %v2170 = vpack.c.b16 %v2020, %v2018
        %v2171 = vpack.c.b16 %v2023, %v2021
        %v2172 = vpack.c.b16 %v2024, %v2022
        %v2173 = vpack.c.b16 %v2027, %v2025
        %v2174 = vpack.c.b16 %v2028, %v2026
        %v2175 = vpack.c.b16 %v2031, %v2029
        %v2176 = vpack.c.b16 %v2032, %v2030
        %v2177 = vpack.c.b16 %v2035, %v2033
        %v2178 = vpack.c.b16 %v2036, %v2034
        %v2179 = vpack.c.b16 %v2039, %v2037
        %v2180 = vpack.c.b16 %v2040, %v2038
        %v2181 = vpack.c.b16 %v2043, %v2041
        %v2182 = vpack.c.b16 %v2044, %v2042
        %v2183 = vpack.c.b16 %v2047, %v2045
        %v2184 = vpack.c.b16 %v2048, %v2046
        %v2185 = vpack.c.b16 %v2051, %v2049
        %v2186 = vpack.c.b16 %v2052, %v2050
        %v2187 = vpack.c.b16 %v2055, %v2053
        %v2188 = vpack.c.b16 %v2056, %v2054
        %v2189 = vpack.c.b16 %v2059, %v2057
        %v2190 = vpack.c.b16 %v2060, %v2058
        %v2191 = vpack.c.b16 %v2063, %v2061
        %v2192 = vpack.c.b16 %v2064, %v2062
        %2321 = vmatpush.bf16.msra.mxu0 %v2079
        %2322 = vmatpush.bf16.msra.mxu0 %v2077
        %2323 = vmatpush.bf16.msra.mxu0 %v2075
        %2324 = vmatpush.bf16.msra.mxu0 %v2073
        %2325 = vmatpush.bf16.msra.mxu0 %v2071
        %2326 = vmatpush.bf16.msra.mxu0 %v2069
        %2327 = vmatpush.bf16.msra.mxu0 %v2067
        %2328 = vmatpush.bf16.msra.mxu0 %v2065
        %2329 = vmatmul.bf16.gmra.mxu0 %v1545
        %v2330 = vpop.f32.mrf.mxu0
        %v2331 = vadd.f32 0.0, %v2330
        %v2332 = vpop.f32.mrf.mxu0
        %v2333 = vadd.f32 0.0, %v2332
        %2334 = vdwg.mxu0
        %2335 = vmatpush.bf16.msra.mxu0 %v2095
        %2336 = vmatpush.bf16.msra.mxu0 %v2093
        %2337 = vmatpush.bf16.msra.mxu0 %v2091
        %2338 = vmatpush.bf16.msra.mxu0 %v2089
        %2339 = vmatpush.bf16.msra.mxu0 %v2087
        %2340 = vmatpush.bf16.msra.mxu0 %v2085
        %2341 = vmatpush.bf16.msra.mxu0 %v2083
        %2342 = vmatpush.bf16.msra.mxu0 %v2081
        %2343 = vmatmul.bf16.gmra.mxu0 %v1546
        %v2344 = vpop.f32.mrf.mxu0
        %v2345 = vadd.f32 %v2331, %v2344
        %v2346 = vpop.f32.mrf.mxu0
        %v2347 = vadd.f32 %v2333, %v2346
        %2348 = vdwg.mxu0
        %2349 = vmatpush.bf16.msra.mxu0 %v2111
        %2350 = vmatpush.bf16.msra.mxu0 %v2109
        %2351 = vmatpush.bf16.msra.mxu0 %v2107
        %2352 = vmatpush.bf16.msra.mxu0 %v2105
        %2353 = vmatpush.bf16.msra.mxu0 %v2103
        %2354 = vmatpush.bf16.msra.mxu0 %v2101
        %2355 = vmatpush.bf16.msra.mxu0 %v2099
        %2356 = vmatpush.bf16.msra.mxu0 %v2097
        %2357 = vmatmul.bf16.gmra.mxu0 %v1547
        %v2358 = vpop.f32.mrf.mxu0
        %v2359 = vadd.f32 %v2345, %v2358
        %v2360 = vpop.f32.mrf.mxu0
        %v2361 = vadd.f32 %v2347, %v2360
        %2362 = vdwg.mxu0
        %2363 = vmatpush.bf16.msra.mxu0 %v2127
        %2364 = vmatpush.bf16.msra.mxu0 %v2125
        %2365 = vmatpush.bf16.msra.mxu0 %v2123
        %2366 = vmatpush.bf16.msra.mxu0 %v2121
        %2367 = vmatpush.bf16.msra.mxu0 %v2119
        %2368 = vmatpush.bf16.msra.mxu0 %v2117
        %2369 = vmatpush.bf16.msra.mxu0 %v2115
        %2370 = vmatpush.bf16.msra.mxu0 %v2113
        %2371 = vmatmul.bf16.gmra.mxu0 %v1548
        %v2372 = vpop.f32.mrf.mxu0
        %v2373 = vadd.f32 %v2359, %v2372
        %v2374 = vpop.f32.mrf.mxu0
        %v2375 = vadd.f32 %v2361, %v2374
        %2376 = vdwg.mxu0
        %2377 = vmatpush.bf16.msra.mxu0 %v2143
        %2378 = vmatpush.bf16.msra.mxu0 %v2141
        %2379 = vmatpush.bf16.msra.mxu0 %v2139
        %2380 = vmatpush.bf16.msra.mxu0 %v2137
        %2381 = vmatpush.bf16.msra.mxu0 %v2135
        %2382 = vmatpush.bf16.msra.mxu0 %v2133
        %2383 = vmatpush.bf16.msra.mxu0 %v2131
        %2384 = vmatpush.bf16.msra.mxu0 %v2129
        %2385 = vmatmul.bf16.gmra.mxu0 %v1549
        %v2386 = vpop.f32.mrf.mxu0
        %v2387 = vadd.f32 %v2373, %v2386
        %v2388 = vpop.f32.mrf.mxu0
        %v2389 = vadd.f32 %v2375, %v2388
        %2390 = vdwg.mxu0
        %2391 = vmatpush.bf16.msra.mxu0 %v2159
        %2392 = vmatpush.bf16.msra.mxu0 %v2157
        %2393 = vmatpush.bf16.msra.mxu0 %v2155
        %2394 = vmatpush.bf16.msra.mxu0 %v2153
        %2395 = vmatpush.bf16.msra.mxu0 %v2151
        %2396 = vmatpush.bf16.msra.mxu0 %v2149
        %2397 = vmatpush.bf16.msra.mxu0 %v2147
        %2398 = vmatpush.bf16.msra.mxu0 %v2145
        %2399 = vmatmul.bf16.gmra.mxu0 %v1550
        %v2400 = vpop.f32.mrf.mxu0
        %v2401 = vadd.f32 %v2387, %v2400
        %v2402 = vpop.f32.mrf.mxu0
        %v2403 = vadd.f32 %v2389, %v2402
        %2404 = vdwg.mxu0
        %2405 = vmatpush.bf16.msra.mxu0 %v2175
        %2406 = vmatpush.bf16.msra.mxu0 %v2173
        %2407 = vmatpush.bf16.msra.mxu0 %v2171
        %2408 = vmatpush.bf16.msra.mxu0 %v2169
        %2409 = vmatpush.bf16.msra.mxu0 %v2167
        %2410 = vmatpush.bf16.msra.mxu0 %v2165
        %2411 = vmatpush.bf16.msra.mxu0 %v2163
        %2412 = vmatpush.bf16.msra.mxu0 %v2161
        %2413 = vmatmul.bf16.gmra.mxu0 %v1551
        %v2414 = vpop.f32.mrf.mxu0
        %v2415 = vadd.f32 %v2401, %v2414
        %v2416 = vpop.f32.mrf.mxu0
        %v2417 = vadd.f32 %v2403, %v2416
        %2418 = vdwg.mxu0
        %2419 = vmatpush.bf16.msra.mxu0 %v2191
        %2420 = vmatpush.bf16.msra.mxu0 %v2189
        %2421 = vmatpush.bf16.msra.mxu0 %v2187
        %2422 = vmatpush.bf16.msra.mxu0 %v2185
        %2423 = vmatpush.bf16.msra.mxu0 %v2183
        %2424 = vmatpush.bf16.msra.mxu0 %v2181
        %2425 = vmatpush.bf16.msra.mxu0 %v2179
        %2426 = vmatpush.bf16.msra.mxu0 %v2177
        %2427 = vmatmul.bf16.gmra.mxu0 %v1552
        %v2428 = vpop.f32.mrf.mxu0
        %v2429 = vadd.f32 %v2415, %v2428
        %v2430 = vpop.f32.mrf.mxu0
        %v2431 = vadd.f32 %v2417, %v2430
        %2432 = vdwg.mxu0
        %2433 = vmatpush.bf16.msra.mxu0 %v2080
        %2434 = vmatpush.bf16.msra.mxu0 %v2078
        %2435 = vmatpush.bf16.msra.mxu0 %v2076
        %2436 = vmatpush.bf16.msra.mxu0 %v2074
        %2437 = vmatpush.bf16.msra.mxu0 %v2072
        %2438 = vmatpush.bf16.msra.mxu0 %v2070
        %2439 = vmatpush.bf16.msra.mxu0 %v2068
        %2440 = vmatpush.bf16.msra.mxu0 %v2066
        %2441 = vmatmul.bf16.gmra.mxu0 %v1545
        %v2442 = vpop.f32.mrf.mxu0
        %v2443 = vadd.f32 0.0, %v2442
        %v2444 = vpop.f32.mrf.mxu0
        %v2445 = vadd.f32 0.0, %v2444
        %2446 = vdwg.mxu0
        %2447 = vmatpush.bf16.msra.mxu0 %v2096
        %2448 = vmatpush.bf16.msra.mxu0 %v2094
        %2449 = vmatpush.bf16.msra.mxu0 %v2092
        %2450 = vmatpush.bf16.msra.mxu0 %v2090
        %2451 = vmatpush.bf16.msra.mxu0 %v2088
        %2452 = vmatpush.bf16.msra.mxu0 %v2086
        %2453 = vmatpush.bf16.msra.mxu0 %v2084
        %2454 = vmatpush.bf16.msra.mxu0 %v2082
        %2455 = vmatmul.bf16.gmra.mxu0 %v1546
        %v2456 = vpop.f32.mrf.mxu0
        %v2457 = vadd.f32 %v2443, %v2456
        %v2458 = vpop.f32.mrf.mxu0
        %v2459 = vadd.f32 %v2445, %v2458
        %2460 = vdwg.mxu0
        %2461 = vmatpush.bf16.msra.mxu0 %v2112
        %2462 = vmatpush.bf16.msra.mxu0 %v2110
        %2463 = vmatpush.bf16.msra.mxu0 %v2108
        %2464 = vmatpush.bf16.msra.mxu0 %v2106
        %2465 = vmatpush.bf16.msra.mxu0 %v2104
        %2466 = vmatpush.bf16.msra.mxu0 %v2102
        %2467 = vmatpush.bf16.msra.mxu0 %v2100
        %2468 = vmatpush.bf16.msra.mxu0 %v2098
        %2469 = vmatmul.bf16.gmra.mxu0 %v1547
        %v2470 = vpop.f32.mrf.mxu0
        %v2471 = vadd.f32 %v2457, %v2470
        %v2472 = vpop.f32.mrf.mxu0
        %v2473 = vadd.f32 %v2459, %v2472
        %2474 = vdwg.mxu0
        %2475 = vmatpush.bf16.msra.mxu0 %v2128
        %2476 = vmatpush.bf16.msra.mxu0 %v2126
        %2477 = vmatpush.bf16.msra.mxu0 %v2124
        %2478 = vmatpush.bf16.msra.mxu0 %v2122
        %2479 = vmatpush.bf16.msra.mxu0 %v2120
        %2480 = vmatpush.bf16.msra.mxu0 %v2118
        %2481 = vmatpush.bf16.msra.mxu0 %v2116
        %2482 = vmatpush.bf16.msra.mxu0 %v2114
        %2483 = vmatmul.bf16.gmra.mxu0 %v1548
        %v2484 = vpop.f32.mrf.mxu0
        %v2485 = vadd.f32 %v2471, %v2484
        %v2486 = vpop.f32.mrf.mxu0
        %v2487 = vadd.f32 %v2473, %v2486
        %2488 = vdwg.mxu0
        %2489 = vmatpush.bf16.msra.mxu0 %v2144
        %2490 = vmatpush.bf16.msra.mxu0 %v2142
        %2491 = vmatpush.bf16.msra.mxu0 %v2140
        %2492 = vmatpush.bf16.msra.mxu0 %v2138
        %2493 = vmatpush.bf16.msra.mxu0 %v2136
        %2494 = vmatpush.bf16.msra.mxu0 %v2134
        %2495 = vmatpush.bf16.msra.mxu0 %v2132
        %2496 = vmatpush.bf16.msra.mxu0 %v2130
        %2497 = vmatmul.bf16.gmra.mxu0 %v1549
        %v2498 = vpop.f32.mrf.mxu0
        %v2499 = vadd.f32 %v2485, %v2498
        %v2500 = vpop.f32.mrf.mxu0
        %v2501 = vadd.f32 %v2487, %v2500
        %2502 = vdwg.mxu0
        %2503 = vmatpush.bf16.msra.mxu0 %v2160
        %2504 = vmatpush.bf16.msra.mxu0 %v2158
        %2505 = vmatpush.bf16.msra.mxu0 %v2156
        %2506 = vmatpush.bf16.msra.mxu0 %v2154
        %2507 = vmatpush.bf16.msra.mxu0 %v2152
        %2508 = vmatpush.bf16.msra.mxu0 %v2150
        %2509 = vmatpush.bf16.msra.mxu0 %v2148
        %2510 = vmatpush.bf16.msra.mxu0 %v2146
        %2511 = vmatmul.bf16.gmra.mxu0 %v1550
        %v2512 = vpop.f32.mrf.mxu0
        %v2513 = vadd.f32 %v2499, %v2512
        %v2514 = vpop.f32.mrf.mxu0
        %v2515 = vadd.f32 %v2501, %v2514
        %2516 = vdwg.mxu0
        %2517 = vmatpush.bf16.msra.mxu0 %v2176
        %2518 = vmatpush.bf16.msra.mxu0 %v2174
        %2519 = vmatpush.bf16.msra.mxu0 %v2172
        %2520 = vmatpush.bf16.msra.mxu0 %v2170
        %2521 = vmatpush.bf16.msra.mxu0 %v2168
        %2522 = vmatpush.bf16.msra.mxu0 %v2166
        %2523 = vmatpush.bf16.msra.mxu0 %v2164
        %2524 = vmatpush.bf16.msra.mxu0 %v2162
        %2525 = vmatmul.bf16.gmra.mxu0 %v1551
        %v2526 = vpop.f32.mrf.mxu0
        %v2527 = vadd.f32 %v2513, %v2526
        %v2528 = vpop.f32.mrf.mxu0
        %v2529 = vadd.f32 %v2515, %v2528
        %2530 = vdwg.mxu0
        %2531 = vmatpush.bf16.msra.mxu0 %v2192
        %2532 = vmatpush.bf16.msra.mxu0 %v2190
        %2533 = vmatpush.bf16.msra.mxu0 %v2188
        %2534 = vmatpush.bf16.msra.mxu0 %v2186
        %2535 = vmatpush.bf16.msra.mxu0 %v2184
        %2536 = vmatpush.bf16.msra.mxu0 %v2182
        %2537 = vmatpush.bf16.msra.mxu0 %v2180
        %2538 = vmatpush.bf16.msra.mxu0 %v2178
        %2539 = vmatmul.bf16.gmra.mxu0 %v1552
        %v2540 = vpop.f32.mrf.mxu0
        %v2541 = vadd.f32 %v2527, %v2540
        %v2542 = vpop.f32.mrf.mxu0
        %v2543 = vadd.f32 %v2529, %v2542
        %2544 = vdwg.mxu0
        %2545 = vst [vmem:[%s192] sm:$0xff] %v2429
        %2546 = vst [vmem:[%s192 + $0x8] sm:$0xff] %v2541
        %2547 = vst [vmem:[%s192 + $0x10] sm:$0xff] %v2431
        %2548 = vst [vmem:[%s192 + $0x18] sm:$0xff] %v2543
        %s2549 = sand.u32 %s108, 1
        %s2550 = scalar_lea.sflag [#allocation4], %s2549
        %s2551 = sand.u32 %s108, 1
        %s2552 = smul.addr %s2551, 32
        %s2553 = scalar_lea.vmem [#allocation5], %s2552
        // Predicated region
        $region37: #{tpu_custom_call.1} parent=31 // pred_check
          %p2554 = pneg %p118
        $region38: #{tpu_custom_call.1} parent=31 // pred_check_branch
          %2556 = sbr.rel (%p2554) target = $region40
        $region39: #{tpu_custom_call.1} parent=31 // pred_region
          %s2557 = smul.u32 2, %s23
          %2559 = vsyncadd %s2550, 0
          %s2560 = smul.addr %s22, 12
          %s2561 = sadd.s32 %s2557, %s2560
          %s2562 = smul.addr %s2561, 8
          %s2563 = scalar_lea.hbm %s3, %s2562
          %s2564 = sshll.u32 %s2553, 4
          %s2565 = int_to_ptr.vmem [resolvable:$true] %s2564
          %s2566 = sshll.u32 %s2563, 4
          %s2567 = int_to_ptr.hbm [resolvable:$true] %s2566
          %2572 = dma.vmem_to_hbm [thread:$0]  %s2565, 512, %s2567, %s2550, 256, 768, 16
        $region40: #{tpu_custom_call.1} parent=31 // pred_fallthru
          _
      $region32: #{tpu_custom_call.1} parent=5 // pred_fallthru
        _
      %p2573 = scmp.le.s32.totalorder 2, %s13
      // Predicated region
      $region41: #{tpu_custom_call.1} parent=5 // pred_check
        %p2574 = pneg %p2573
      $region42: #{tpu_custom_call.1} parent=5 // pred_check_branch
        %2576 = sbr.rel (%p2574) target = $region44
      $region43: #{tpu_custom_call.1} parent=5 // pred_region
        %s2577 = ssub.s32 %s13, 2
        // Predicated region
        $region45: #{tpu_custom_call.1} parent=43 // pred_check
          %p2578 = pneg %p124
        $region46: #{tpu_custom_call.1} parent=43 // pred_check_branch
          %2580 = sbr.rel (%p2578) target = $region48
        $region47: #{tpu_custom_call.1} parent=43 // pred_region
          %s2581 = sand.u32 %s109, 1
          %s2582 = scalar_lea.sflag [#allocation4], %s2581
          %s2583 = sand.u32 %s109, 1
          %s2584 = smul.addr %s2583, 32
          %s2585 = scalar_lea.vmem [#allocation5], %s2584
          %2587 = dma.done %s2582, 512
        $region48: #{tpu_custom_call.1} parent=43 // pred_fallthru
          _
      $region44: #{tpu_custom_call.1} parent=5 // pred_fallthru
        _
    $region6: #{tpu_custom_call.1} parent=1 // loop_footer
      %s17 = sadd.s32 1, %s13
    $region7: #{tpu_custom_call.1} parent=1 // loop_footer_branch
      %12 = sbr.rel target = $region3
    $region8: #{tpu_custom_call.1} parent=1 // loop_exit
      _
    %2588 = vsyncpa [#allocation3], 1
    %s2589 = scalar_lea.sflag [#allocation3], 1
    %2590 = vsyncpa %s2589, 1
    %2591 = vsyncpa [#allocation4], 1
    %s2592 = scalar_lea.sflag [#allocation4], 1
    %2593 = vsyncpa %s2592, 1

</llo_original>
